<compile_context>
chip_gen: v7x
topology: tpu7x:2x2x1
jax: 0.10.0
libtpu: 0.0.40
codegen_flags: <defaults>
</compile_context>

<pallas_src>
import functools
import numpy as np
import jax
import jax.numpy as jnp
from jax.experimental import pallas as pl
from jax.experimental.pallas import tpu as pltpu


# ----------------------------- shared math -----------------------------------
def _layer_norm(x, w, b, eps):
    # x: (M, E); w, b: (1, E).  Biased variance, matches F.layer_norm.
    mean = jnp.mean(x, axis=-1, keepdims=True)
    xc = x - mean
    var = jnp.mean(xc * xc, axis=-1, keepdims=True)
    return xc * jax.lax.rsqrt(var + eps) * w + b


def _gelu(x, exact):
    if exact:
        # PyTorch F.gelu default (approximate='none').
        return 0.5 * x * (1.0 + jax.lax.erf(x * np.float32(1.0 / np.sqrt(2.0))))
    # tanh approximation (EUP-friendly, guaranteed to lower).
    c = np.float32(np.sqrt(2.0 / np.pi))
    return 0.5 * x * (1.0 + jnp.tanh(c * (x + 0.044715 * x * x * x)))


def _block_math(x3, ln1_w, ln1_b, w_qkv, b_qkv, w_o, b_o,
                ln2_w, ln2_b, w_fc, b_fc, w_mp, b_mp,
                *, n_head, eps, exact_gelu, approx_recip, compute_dtype):
    """Full transformer block on a (B_blk, T, E) slab.

    w_qkv: (E, 3E) = W_c_attn.T;  w_o: (E, E) = W_c_proj.T (lane-dense layouts).
    Matmul operands are cast to `compute_dtype` with f32 accumulation; LN stats,
    softmax, GELU and residuals stay f32.
    """
    Bb, T, E = x3.shape
    D = E // n_head
    M = Bb * T
    scale = np.float32(1.0 / np.sqrt(D))
    cd = compute_dtype
    f32 = jnp.float32

    x = x3.reshape(M, E)                              # fold (B_blk, T) into M

    # ---- ln_1 + fused full-width QKV projection ----
    xn = _layer_norm(x, ln1_w, ln1_b, eps)
    qkv = jnp.dot(xn.astype(cd), w_qkv.astype(cd),
                  preferred_element_type=f32) + b_qkv          # (M, 3E), f32

    # causal additive bias, hoisted (kept f32: -1e30 must never be added in bf16)
    row = jax.lax.broadcasted_iota(jnp.int32, (T, T), 0)
    col = jax.lax.broadcasted_iota(jnp.int32, (T, T), 1)
    mask_bias = jnp.where(row >= col, 0.0, -1e30).astype(f32)

    # ---- per-sequence, per-head scores / softmax / PV (statically unrolled) ----
    per_batch = []
    for b in range(Bb):
        r0 = b * T
        heads = []
        for h in range(n_head):
            c = h * D
            qh = qkv[r0:r0 + T, c:c + D] * scale
            kh = qkv[r0:r0 + T, E + c:E + c + D]
            vh = qkv[r0:r0 + T, 2 * E + c:2 * E + c + D]
            s = jax.lax.dot_general(qh.astype(cd), kh.astype(cd),
                                    (((1,), (1,)), ((), ())),
                                    preferred_element_type=f32)   # (T, T)
            s = s + mask_bias
            s = s - jnp.max(s, axis=-1, keepdims=True)
            p = jnp.exp(s)
            denom = jnp.sum(p, axis=-1, keepdims=True)
            if approx_recip:
                p = p * pl.reciprocal(denom, approx=True)
            else:
                p = p / denom
            heads.append(jnp.dot(p.astype(cd), vh.astype(cd),
                                 preferred_element_type=f32))     # (T, D)
        per_batch.append(jnp.concatenate(heads, axis=-1))          # (T, E)
    attn = per_batch[0] if Bb == 1 else jnp.concatenate(per_batch, axis=0)

    # ---- single full-width output projection + residual 1 ----
    y = jnp.dot(attn.astype(cd), w_o.astype(cd), preferred_element_type=f32) + b_o
    x1 = x + y

    # ---- ln_2 + MLP + residual 2 ----
    x1n = _layer_norm(x1, ln2_w, ln2_b, eps)
    hid = jnp.dot(x1n.astype(cd), w_fc.astype(cd), preferred_element_type=f32) + b_fc
    hid = _gelu(hid, exact_gelu)
    m = jnp.dot(hid.astype(cd), w_mp.astype(cd), preferred_element_type=f32) + b_mp
    return (x1 + m).reshape(Bb, T, E)


# ------------------------------- kernel ---------------------------------------
def block_kernel(x_ref,
                 ln1_w_ref, ln1_b_ref, w_qkv_ref, b_qkv_ref, w_o_ref, b_o_ref,
                 ln2_w_ref, ln2_b_ref, w_fc_ref, b_fc_ref, w_mp_ref, b_mp_ref,
                 out_ref, *, n_head, eps, exact_gelu, approx_recip, compute_dtype):
    out = _block_math(
        x_ref[...],
        ln1_w_ref[...], ln1_b_ref[...], w_qkv_ref[...], b_qkv_ref[...],
        w_o_ref[...], b_o_ref[...], ln2_w_ref[...], ln2_b_ref[...],
        w_fc_ref[...], b_fc_ref[...], w_mp_ref[...], b_mp_ref[...],
        n_head=n_head, eps=eps, exact_gelu=exact_gelu,
        approx_recip=approx_recip, compute_dtype=compute_dtype)
    out_ref[...] = out.astype(out_ref.dtype)


# indices (in the param tuple) of matmul weight matrices (bf16-castable).
_MATMUL_WEIGHT_IDX = (2, 4, 8, 10)


def _vmem_limit_bytes(params, b_blk, T, E):
    """Footprint-based VMEM limit with headroom, v7x-safe cap at 64 MiB."""
    weight = sum(int(np.prod(p.shape)) * jnp.dtype(p.dtype).itemsize for p in params)
    io = 2 * (2 * b_blk * T * E * 4)                 # x & out blocks, double-buffered
    m = b_blk * T
    acts = 4 * (m * 3 * E + m * 4 * E + 4 * m * E + 2 * T * T)
    need = 2 * weight + io + acts
    return int(min(64 << 20, max(32 << 20, int(need * 1.5))))


def block_forward(x, params, *, n_head, eps=1e-5, exact_gelu=False,
                  precise=False, batch_block=None):
    B, T, E = x.shape
    assert E % n_head == 0
    if batch_block is None:
        # Keep the parallel grid extent even (v7x has 2 TCs) while blocking
        # multiple batch rows per step when B allows it.
        batch_block = B // 2 if (B % 2 == 0) else B
    assert B % batch_block == 0
    grid = (B // batch_block,)

    params = list(params)
    if not precise:
        # Production default: bf16 matmul weights (half the weight DMA/VMEM);
        # biases and LN params stay f32.
        for i in _MATMUL_WEIGHT_IDX:
            params[i] = params[i].astype(jnp.bfloat16)
    compute_dtype = jnp.float32 if precise else jnp.bfloat16

    kernel = functools.partial(
        block_kernel, n_head=n_head, eps=eps, exact_gelu=exact_gelu,
        approx_recip=not precise, compute_dtype=compute_dtype)

    x_spec = pl.BlockSpec((batch_block, T, E), lambda b: (b, 0, 0))
    out_spec = pl.BlockSpec((batch_block, T, E), lambda b: (b, 0, 0))

    def w_spec(p):
        # Whole weight resident; constant block index across the grid.
        return pl.BlockSpec(p.shape, lambda b, nd=p.ndim: (0,) * nd)

    return pl.pallas_call(
        kernel,
        out_shape=jax.ShapeDtypeStruct((B, T, E), x.dtype),
        grid=grid,
        in_specs=[x_spec] + [w_spec(p) for p in params],
        out_specs=out_spec,
        compiler_params=pltpu.CompilerParams(
            dimension_semantics=("parallel",),
            vmem_limit_bytes=_vmem_limit_bytes(params, batch_block, T, E)),
    )(x, *params)


# ------------------------------ reference -------------------------------------
def block_reference(x, params, *, n_head, eps=1e-5, exact_gelu=False):
    return _block_math(x, *params, n_head=n_head, eps=eps, exact_gelu=exact_gelu,
                       approx_recip=False, compute_dtype=jnp.float32)


# --------------------------- parameter construction ----------------------------
def make_params(key, n_embed):
    """Torch-equivalent layout: linear weights stored as (in, out) = W_torch.T."""
    ks = jax.random.split(key, 8)
    std, f32 = 0.02, jnp.float32
    ln1_w = jnp.ones((1, n_embed), f32)
    ln1_b = jnp.ones((1, n_embed), f32)   # module initializes LayerNorm bias to ones
    ln2_w = jnp.ones((1, n_embed), f32)
    ln2_b = jnp.ones((1, n_embed), f32)
    w_qkv = std * jax.random.normal(ks[0], (n_embed, 3 * n_embed), f32)  # c_attn.W.T
    b_qkv = std * jax.random.normal(ks[1], (1, 3 * n_embed), f32)
    w_o = std * jax.random.normal(ks[2], (n_embed, n_embed), f32)        # c_proj.W.T
    b_o = std * jax.random.normal(ks[3], (1, n_embed), f32)
    w_fc = std * jax.random.normal(ks[4], (n_embed, 4 * n_embed), f32)
    b_fc = std * jax.random.normal(ks[5], (1, 4 * n_embed), f32)
    w_mp = std * jax.random.normal(ks[6], (4 * n_embed, n_embed), f32)
    b_mp = std * jax.random.normal(ks[7], (1, n_embed), f32)
    return (ln1_w, ln1_b, w_qkv, b_qkv, w_o, b_o,
            ln2_w, ln2_b, w_fc, b_fc, w_mp, b_mp)


# --------------------------------- main ----------------------------------------
if __name__ == "__main__":
    # TODO(synk): PyTorch F.gelu defaults to the exact erf form; we default to the
    # tanh approximation (max abs deviation ~1e-3) since lax.erf lowering is not
    # guaranteed on every Mosaic build; pass exact_gelu=True to bit-match if it is.
    B, T, N_EMBED, N_HEAD = 2, 8, 32, 4

    key = jax.random.PRNGKey(0)
    kx, kp = jax.random.split(key)
    x = jax.random.normal(kx, (B, T, N_EMBED), jnp.float32)
    params = make_params(kp, N_EMBED)

    ref = jax.block_until_ready(block_reference(x, params, n_head=N_HEAD))

    # Production default: bf16 matmul operands, f32 accumulation/stats, EUP recip.
    out_fast = jax.block_until_ready(block_forward(x, params, n_head=N_HEAD))
    np.testing.assert_allclose(np.asarray(out_fast), np.asarray(ref),
                               rtol=2e-2, atol=2e-2)

    # Precise path: f32 matmul operands, exact-division softmax.
    out_precise = jax.block_until_ready(
        block_forward(x, params, n_head=N_HEAD, precise=True))
    np.testing.assert_allclose(np.asarray(out_precise), np.asarray(ref),
                               rtol=1e-3, atol=1e-3)

    print("KERNEL_OK")
</pallas_src>

<mosaic_0001>
module attributes {stable_mosaic.version = 11 : i64} {
  func.func @block_kernel(%arg0: i32, %arg1: memref<1x8x32xf32, #tpu.memory_space<vmem>>, %arg2: memref<1x32xf32, #tpu.memory_space<vmem>>, %arg3: memref<1x32xf32, #tpu.memory_space<vmem>>, %arg4: memref<32x96xbf16, #tpu.memory_space<vmem>>, %arg5: memref<1x96xf32, #tpu.memory_space<vmem>>, %arg6: memref<32x32xbf16, #tpu.memory_space<vmem>>, %arg7: memref<1x32xf32, #tpu.memory_space<vmem>>, %arg8: memref<1x32xf32, #tpu.memory_space<vmem>>, %arg9: memref<1x32xf32, #tpu.memory_space<vmem>>, %arg10: memref<32x128xbf16, #tpu.memory_space<vmem>>, %arg11: memref<1x128xf32, #tpu.memory_space<vmem>>, %arg12: memref<128x32xbf16, #tpu.memory_space<vmem>>, %arg13: memref<1x32xf32, #tpu.memory_space<vmem>>, %arg14: memref<1x8x32xf32, #tpu.memory_space<vmem>>) attributes {dimension_semantics = [#tpu.dimension_semantics<parallel>], iteration_bounds = array<i64: 2>, scalar_prefetch = 0 : i64, scratch_operands = 0 : i64, tpu.core_type = #tpu.core_type<tc>, window_params = [{transform_indices = @transform_0, window_bounds = array<i64: 1, 8, 32>}, {pipeline_mode = #tpu.pipeline_mode<synchronous>, transform_indices = @transform_1, window_bounds = array<i64: 1, 32>}, {pipeline_mode = #tpu.pipeline_mode<synchronous>, transform_indices = @transform_2, window_bounds = array<i64: 1, 32>}, {pipeline_mode = #tpu.pipeline_mode<synchronous>, transform_indices = @transform_3, window_bounds = array<i64: 32, 96>}, {pipeline_mode = #tpu.pipeline_mode<synchronous>, transform_indices = @transform_4, window_bounds = array<i64: 1, 96>}, {pipeline_mode = #tpu.pipeline_mode<synchronous>, transform_indices = @transform_5, window_bounds = array<i64: 32, 32>}, {pipeline_mode = #tpu.pipeline_mode<synchronous>, transform_indices = @transform_6, window_bounds = array<i64: 1, 32>}, {pipeline_mode = #tpu.pipeline_mode<synchronous>, transform_indices = @transform_7, window_bounds = array<i64: 1, 32>}, {pipeline_mode = #tpu.pipeline_mode<synchronous>, transform_indices = @transform_8, window_bounds = array<i64: 1, 32>}, {pipeline_mode = #tpu.pipeline_mode<synchronous>, transform_indices = @transform_9, window_bounds = array<i64: 32, 128>}, {pipeline_mode = #tpu.pipeline_mode<synchronous>, transform_indices = @transform_10, window_bounds = array<i64: 1, 128>}, {pipeline_mode = #tpu.pipeline_mode<synchronous>, transform_indices = @transform_11, window_bounds = array<i64: 128, 32>}, {pipeline_mode = #tpu.pipeline_mode<synchronous>, transform_indices = @transform_12, window_bounds = array<i64: 1, 32>}, {transform_indices = @transform_13, window_bounds = array<i64: 1, 8, 32>}]} {
    %c0 = arith.constant 0 : index
    %c0_0 = arith.constant 0 : index
    %c0_1 = arith.constant 0 : index
    %0 = vector.load %arg1[%c0, %c0_0, %c0_1] : memref<1x8x32xf32, #tpu.memory_space<vmem>>, vector<1x8x32xf32>
    %c0_2 = arith.constant 0 : index
    %c0_3 = arith.constant 0 : index
    %1 = vector.load %arg2[%c0_2, %c0_3] : memref<1x32xf32, #tpu.memory_space<vmem>>, vector<1x32xf32>
    %c0_4 = arith.constant 0 : index
    %c0_5 = arith.constant 0 : index
    %2 = vector.load %arg3[%c0_4, %c0_5] : memref<1x32xf32, #tpu.memory_space<vmem>>, vector<1x32xf32>
    %c0_6 = arith.constant 0 : index
    %c0_7 = arith.constant 0 : index
    %3 = vector.load %arg4[%c0_6, %c0_7] : memref<32x96xbf16, #tpu.memory_space<vmem>>, vector<32x96xbf16>
    %c0_8 = arith.constant 0 : index
    %c0_9 = arith.constant 0 : index
    %4 = vector.load %arg5[%c0_8, %c0_9] : memref<1x96xf32, #tpu.memory_space<vmem>>, vector<1x96xf32>
    %c0_10 = arith.constant 0 : index
    %c0_11 = arith.constant 0 : index
    %5 = vector.load %arg6[%c0_10, %c0_11] : memref<32x32xbf16, #tpu.memory_space<vmem>>, vector<32x32xbf16>
    %c0_12 = arith.constant 0 : index
    %c0_13 = arith.constant 0 : index
    %6 = vector.load %arg7[%c0_12, %c0_13] : memref<1x32xf32, #tpu.memory_space<vmem>>, vector<1x32xf32>
    %c0_14 = arith.constant 0 : index
    %c0_15 = arith.constant 0 : index
    %7 = vector.load %arg8[%c0_14, %c0_15] : memref<1x32xf32, #tpu.memory_space<vmem>>, vector<1x32xf32>
    %c0_16 = arith.constant 0 : index
    %c0_17 = arith.constant 0 : index
    %8 = vector.load %arg9[%c0_16, %c0_17] : memref<1x32xf32, #tpu.memory_space<vmem>>, vector<1x32xf32>
    %c0_18 = arith.constant 0 : index
    %c0_19 = arith.constant 0 : index
    %9 = vector.load %arg10[%c0_18, %c0_19] : memref<32x128xbf16, #tpu.memory_space<vmem>>, vector<32x128xbf16>
    %c0_20 = arith.constant 0 : index
    %c0_21 = arith.constant 0 : index
    %10 = vector.load %arg11[%c0_20, %c0_21] : memref<1x128xf32, #tpu.memory_space<vmem>>, vector<1x128xf32>
    %c0_22 = arith.constant 0 : index
    %c0_23 = arith.constant 0 : index
    %11 = vector.load %arg12[%c0_22, %c0_23] : memref<128x32xbf16, #tpu.memory_space<vmem>>, vector<128x32xbf16>
    %c0_24 = arith.constant 0 : index
    %c0_25 = arith.constant 0 : index
    %12 = vector.load %arg13[%c0_24, %c0_25] : memref<1x32xf32, #tpu.memory_space<vmem>>, vector<1x32xf32>
    %13 = vector.shape_cast %0 : vector<1x8x32xf32> to vector<8x32xf32>
    %cst = arith.constant dense<0.000000e+00> : vector<8xf32>
    %14 = vector.multi_reduction <add>, %13, %cst [1] : vector<8x32xf32> to vector<8xf32>
    %15 = vector.shape_cast %14 : vector<8xf32> to vector<8x1xf32>
    %cst_26 = arith.constant 3.200000e+01 : f32
    %16 = vector.broadcast %cst_26 : f32 to vector<8x1xf32>
    %17 = arith.divf %15, %16 : vector<8x1xf32>
    %18 = vector.broadcast %17 : vector<8x1xf32> to vector<8x32xf32>
    %19 = arith.subf %13, %18 : vector<8x32xf32>
    %20 = arith.mulf %19, %19 : vector<8x32xf32>
    %cst_27 = arith.constant dense<0.000000e+00> : vector<8xf32>
    %21 = vector.multi_reduction <add>, %20, %cst_27 [1] : vector<8x32xf32> to vector<8xf32>
    %22 = vector.shape_cast %21 : vector<8xf32> to vector<8x1xf32>
    %cst_28 = arith.constant 3.200000e+01 : f32
    %23 = vector.broadcast %cst_28 : f32 to vector<8x1xf32>
    %24 = arith.divf %22, %23 : vector<8x1xf32>
    %cst_29 = arith.constant 9.99999974E-6 : f32
    %25 = vector.broadcast %cst_29 : f32 to vector<8x1xf32>
    %26 = arith.addf %24, %25 : vector<8x1xf32>
    %27 = math.rsqrt %26 : vector<8x1xf32>
    %28 = vector.broadcast %27 : vector<8x1xf32> to vector<8x32xf32>
    %29 = arith.mulf %19, %28 : vector<8x32xf32>
    %30 = vector.broadcast %1 : vector<1x32xf32> to vector<8x32xf32>
    %31 = arith.mulf %29, %30 : vector<8x32xf32>
    %32 = vector.broadcast %2 : vector<1x32xf32> to vector<8x32xf32>
    %33 = arith.addf %31, %32 : vector<8x32xf32>
    %34 = arith.truncf %33 : vector<8x32xf32> to vector<8x32xbf16>
    %cst_30 = arith.constant dense<0.000000e+00> : vector<8x96xf32>
    %35 = tpu.matmul %34, %3, %cst_30 {dimension_numbers = #tpu.dot_dimension_numbers<[1], [0], [0], [1], [0, 0, 1, 1], [], []>} : vector<8x32xbf16>, vector<32x96xbf16>, vector<8x96xf32> -> vector<8x96xf32>
    %36 = vector.broadcast %4 : vector<1x96xf32> to vector<8x96xf32>
    %37 = arith.addf %35, %36 : vector<8x96xf32>
    %38 = tpu.iota {dimensions = array<i32: 0>} : vector<8x8xi32>
    %39 = tpu.iota {dimensions = array<i32: 1>} : vector<8x8xi32>
    %40 = arith.cmpi sge, %38, %39 : vector<8x8xi32>
    %cst_31 = arith.constant 0.000000e+00 : f32
    %cst_32 = arith.constant -1.000000e+30 : f32
    %41 = vector.broadcast %cst_31 : f32 to vector<8x8xf32>
    %42 = vector.broadcast %cst_32 : f32 to vector<8x8xf32>
    %43 = arith.select %40, %41, %42 : vector<8x8xi1>, vector<8x8xf32>
    %44 = vector.extract_strided_slice %37 {offsets = [0, 0], sizes = [8, 8], strides = [1, 1]} : vector<8x96xf32> to vector<8x8xf32>
    %cst_33 = arith.constant 0.353553385 : f32
    %45 = vector.broadcast %cst_33 : f32 to vector<8x8xf32>
    %46 = arith.mulf %44, %45 : vector<8x8xf32>
    %47 = vector.extract_strided_slice %37 {offsets = [0, 32], sizes = [8, 8], strides = [1, 1]} : vector<8x96xf32> to vector<8x8xf32>
    %48 = vector.extract_strided_slice %37 {offsets = [0, 64], sizes = [8, 8], strides = [1, 1]} : vector<8x96xf32> to vector<8x8xf32>
    %49 = arith.truncf %46 : vector<8x8xf32> to vector<8x8xbf16>
    %50 = arith.truncf %47 : vector<8x8xf32> to vector<8x8xbf16>
    %cst_34 = arith.constant dense<0.000000e+00> : vector<8x8xf32>
    %51 = tpu.matmul %49, %50, %cst_34 {dimension_numbers = #tpu.dot_dimension_numbers<[1], [1], [0], [0], [0, 0, 1, 0], [], []>} : vector<8x8xbf16>, vector<8x8xbf16>, vector<8x8xf32> -> vector<8x8xf32>
    %52 = arith.addf %51, %43 : vector<8x8xf32>
    %cst_35 = arith.constant dense<0xFF800000> : vector<8xf32>
    %53 = vector.multi_reduction <maximumf>, %52, %cst_35 [1] : vector<8x8xf32> to vector<8xf32>
    %54 = vector.shape_cast %53 : vector<8xf32> to vector<8x1xf32>
    %55 = vector.broadcast %54 : vector<8x1xf32> to vector<8x8xf32>
    %56 = arith.subf %52, %55 : vector<8x8xf32>
    %57 = math.exp %56 : vector<8x8xf32>
    %cst_36 = arith.constant dense<0.000000e+00> : vector<8xf32>
    %58 = vector.multi_reduction <add>, %57, %cst_36 [1] : vector<8x8xf32> to vector<8xf32>
    %59 = vector.shape_cast %58 : vector<8xf32> to vector<8x1xf32>
    %60 = tpu.reciprocal %59 {approx = true} : vector<8x1xf32> -> vector<8x1xf32>
    %61 = vector.broadcast %60 : vector<8x1xf32> to vector<8x8xf32>
    %62 = arith.mulf %57, %61 : vector<8x8xf32>
    %63 = arith.truncf %62 : vector<8x8xf32> to vector<8x8xbf16>
    %64 = arith.truncf %48 : vector<8x8xf32> to vector<8x8xbf16>
    %cst_37 = arith.constant dense<0.000000e+00> : vector<8x8xf32>
    %65 = tpu.matmul %63, %64, %cst_37 {dimension_numbers = #tpu.dot_dimension_numbers<[1], [0], [0], [1], [0, 0, 1, 1], [], []>} : vector<8x8xbf16>, vector<8x8xbf16>, vector<8x8xf32> -> vector<8x8xf32>
    %66 = vector.extract_strided_slice %37 {offsets = [0, 8], sizes = [8, 8], strides = [1, 1]} : vector<8x96xf32> to vector<8x8xf32>
    %cst_38 = arith.constant 0.353553385 : f32
    %67 = vector.broadcast %cst_38 : f32 to vector<8x8xf32>
    %68 = arith.mulf %66, %67 : vector<8x8xf32>
    %69 = vector.extract_strided_slice %37 {offsets = [0, 40], sizes = [8, 8], strides = [1, 1]} : vector<8x96xf32> to vector<8x8xf32>
    %70 = vector.extract_strided_slice %37 {offsets = [0, 72], sizes = [8, 8], strides = [1, 1]} : vector<8x96xf32> to vector<8x8xf32>
    %71 = arith.truncf %68 : vector<8x8xf32> to vector<8x8xbf16>
    %72 = arith.truncf %69 : vector<8x8xf32> to vector<8x8xbf16>
    %cst_39 = arith.constant dense<0.000000e+00> : vector<8x8xf32>
    %73 = tpu.matmul %71, %72, %cst_39 {dimension_numbers = #tpu.dot_dimension_numbers<[1], [1], [0], [0], [0, 0, 1, 0], [], []>} : vector<8x8xbf16>, vector<8x8xbf16>, vector<8x8xf32> -> vector<8x8xf32>
    %74 = arith.addf %73, %43 : vector<8x8xf32>
    %cst_40 = arith.constant dense<0xFF800000> : vector<8xf32>
    %75 = vector.multi_reduction <maximumf>, %74, %cst_40 [1] : vector<8x8xf32> to vector<8xf32>
    %76 = vector.shape_cast %75 : vector<8xf32> to vector<8x1xf32>
    %77 = vector.broadcast %76 : vector<8x1xf32> to vector<8x8xf32>
    %78 = arith.subf %74, %77 : vector<8x8xf32>
    %79 = math.exp %78 : vector<8x8xf32>
    %cst_41 = arith.constant dense<0.000000e+00> : vector<8xf32>
    %80 = vector.multi_reduction <add>, %79, %cst_41 [1] : vector<8x8xf32> to vector<8xf32>
    %81 = vector.shape_cast %80 : vector<8xf32> to vector<8x1xf32>
    %82 = tpu.reciprocal %81 {approx = true} : vector<8x1xf32> -> vector<8x1xf32>
    %83 = vector.broadcast %82 : vector<8x1xf32> to vector<8x8xf32>
    %84 = arith.mulf %79, %83 : vector<8x8xf32>
    %85 = arith.truncf %84 : vector<8x8xf32> to vector<8x8xbf16>
    %86 = arith.truncf %70 : vector<8x8xf32> to vector<8x8xbf16>
    %cst_42 = arith.constant dense<0.000000e+00> : vector<8x8xf32>
    %87 = tpu.matmul %85, %86, %cst_42 {dimension_numbers = #tpu.dot_dimension_numbers<[1], [0], [0], [1], [0, 0, 1, 1], [], []>} : vector<8x8xbf16>, vector<8x8xbf16>, vector<8x8xf32> -> vector<8x8xf32>
    %88 = vector.extract_strided_slice %37 {offsets = [0, 16], sizes = [8, 8], strides = [1, 1]} : vector<8x96xf32> to vector<8x8xf32>
    %cst_43 = arith.constant 0.353553385 : f32
    %89 = vector.broadcast %cst_43 : f32 to vector<8x8xf32>
    %90 = arith.mulf %88, %89 : vector<8x8xf32>
    %91 = vector.extract_strided_slice %37 {offsets = [0, 48], sizes = [8, 8], strides = [1, 1]} : vector<8x96xf32> to vector<8x8xf32>
    %92 = vector.extract_strided_slice %37 {offsets = [0, 80], sizes = [8, 8], strides = [1, 1]} : vector<8x96xf32> to vector<8x8xf32>
    %93 = arith.truncf %90 : vector<8x8xf32> to vector<8x8xbf16>
    %94 = arith.truncf %91 : vector<8x8xf32> to vector<8x8xbf16>
    %cst_44 = arith.constant dense<0.000000e+00> : vector<8x8xf32>
    %95 = tpu.matmul %93, %94, %cst_44 {dimension_numbers = #tpu.dot_dimension_numbers<[1], [1], [0], [0], [0, 0, 1, 0], [], []>} : vector<8x8xbf16>, vector<8x8xbf16>, vector<8x8xf32> -> vector<8x8xf32>
    %96 = arith.addf %95, %43 : vector<8x8xf32>
    %cst_45 = arith.constant dense<0xFF800000> : vector<8xf32>
    %97 = vector.multi_reduction <maximumf>, %96, %cst_45 [1] : vector<8x8xf32> to vector<8xf32>
    %98 = vector.shape_cast %97 : vector<8xf32> to vector<8x1xf32>
    %99 = vector.broadcast %98 : vector<8x1xf32> to vector<8x8xf32>
    %100 = arith.subf %96, %99 : vector<8x8xf32>
    %101 = math.exp %100 : vector<8x8xf32>
    %cst_46 = arith.constant dense<0.000000e+00> : vector<8xf32>
    %102 = vector.multi_reduction <add>, %101, %cst_46 [1] : vector<8x8xf32> to vector<8xf32>
    %103 = vector.shape_cast %102 : vector<8xf32> to vector<8x1xf32>
    %104 = tpu.reciprocal %103 {approx = true} : vector<8x1xf32> -> vector<8x1xf32>
    %105 = vector.broadcast %104 : vector<8x1xf32> to vector<8x8xf32>
    %106 = arith.mulf %101, %105 : vector<8x8xf32>
    %107 = arith.truncf %106 : vector<8x8xf32> to vector<8x8xbf16>
    %108 = arith.truncf %92 : vector<8x8xf32> to vector<8x8xbf16>
    %cst_47 = arith.constant dense<0.000000e+00> : vector<8x8xf32>
    %109 = tpu.matmul %107, %108, %cst_47 {dimension_numbers = #tpu.dot_dimension_numbers<[1], [0], [0], [1], [0, 0, 1, 1], [], []>} : vector<8x8xbf16>, vector<8x8xbf16>, vector<8x8xf32> -> vector<8x8xf32>
    %110 = vector.extract_strided_slice %37 {offsets = [0, 24], sizes = [8, 8], strides = [1, 1]} : vector<8x96xf32> to vector<8x8xf32>
    %cst_48 = arith.constant 0.353553385 : f32
    %111 = vector.broadcast %cst_48 : f32 to vector<8x8xf32>
    %112 = arith.mulf %110, %111 : vector<8x8xf32>
    %113 = vector.extract_strided_slice %37 {offsets = [0, 56], sizes = [8, 8], strides = [1, 1]} : vector<8x96xf32> to vector<8x8xf32>
    %114 = vector.extract_strided_slice %37 {offsets = [0, 88], sizes = [8, 8], strides = [1, 1]} : vector<8x96xf32> to vector<8x8xf32>
    %115 = arith.truncf %112 : vector<8x8xf32> to vector<8x8xbf16>
    %116 = arith.truncf %113 : vector<8x8xf32> to vector<8x8xbf16>
    %cst_49 = arith.constant dense<0.000000e+00> : vector<8x8xf32>
    %117 = tpu.matmul %115, %116, %cst_49 {dimension_numbers = #tpu.dot_dimension_numbers<[1], [1], [0], [0], [0, 0, 1, 0], [], []>} : vector<8x8xbf16>, vector<8x8xbf16>, vector<8x8xf32> -> vector<8x8xf32>
    %118 = arith.addf %117, %43 : vector<8x8xf32>
    %cst_50 = arith.constant dense<0xFF800000> : vector<8xf32>
    %119 = vector.multi_reduction <maximumf>, %118, %cst_50 [1] : vector<8x8xf32> to vector<8xf32>
    %120 = vector.shape_cast %119 : vector<8xf32> to vector<8x1xf32>
    %121 = vector.broadcast %120 : vector<8x1xf32> to vector<8x8xf32>
    %122 = arith.subf %118, %121 : vector<8x8xf32>
    %123 = math.exp %122 : vector<8x8xf32>
    %cst_51 = arith.constant dense<0.000000e+00> : vector<8xf32>
    %124 = vector.multi_reduction <add>, %123, %cst_51 [1] : vector<8x8xf32> to vector<8xf32>
    %125 = vector.shape_cast %124 : vector<8xf32> to vector<8x1xf32>
    %126 = tpu.reciprocal %125 {approx = true} : vector<8x1xf32> -> vector<8x1xf32>
    %127 = vector.broadcast %126 : vector<8x1xf32> to vector<8x8xf32>
    %128 = arith.mulf %123, %127 : vector<8x8xf32>
    %129 = arith.truncf %128 : vector<8x8xf32> to vector<8x8xbf16>
    %130 = arith.truncf %114 : vector<8x8xf32> to vector<8x8xbf16>
    %cst_52 = arith.constant dense<0.000000e+00> : vector<8x8xf32>
    %131 = tpu.matmul %129, %130, %cst_52 {dimension_numbers = #tpu.dot_dimension_numbers<[1], [0], [0], [1], [0, 0, 1, 1], [], []>} : vector<8x8xbf16>, vector<8x8xbf16>, vector<8x8xf32> -> vector<8x8xf32>
    %132 = tpu.concatenate %65, %87, %109, %131 in 1 : vector<8x8xf32>, vector<8x8xf32>, vector<8x8xf32>, vector<8x8xf32> -> vector<8x32xf32>
    %133 = arith.truncf %132 : vector<8x32xf32> to vector<8x32xbf16>
    %cst_53 = arith.constant dense<0.000000e+00> : vector<8x32xf32>
    %134 = tpu.matmul %133, %5, %cst_53 {dimension_numbers = #tpu.dot_dimension_numbers<[1], [0], [0], [1], [0, 0, 1, 1], [], []>} : vector<8x32xbf16>, vector<32x32xbf16>, vector<8x32xf32> -> vector<8x32xf32>
    %135 = vector.broadcast %6 : vector<1x32xf32> to vector<8x32xf32>
    %136 = arith.addf %134, %135 : vector<8x32xf32>
    %137 = arith.addf %13, %136 : vector<8x32xf32>
    %cst_54 = arith.constant dense<0.000000e+00> : vector<8xf32>
    %138 = vector.multi_reduction <add>, %137, %cst_54 [1] : vector<8x32xf32> to vector<8xf32>
    %139 = vector.shape_cast %138 : vector<8xf32> to vector<8x1xf32>
    %cst_55 = arith.constant 3.200000e+01 : f32
    %140 = vector.broadcast %cst_55 : f32 to vector<8x1xf32>
    %141 = arith.divf %139, %140 : vector<8x1xf32>
    %142 = vector.broadcast %141 : vector<8x1xf32> to vector<8x32xf32>
    %143 = arith.subf %137, %142 : vector<8x32xf32>
    %144 = arith.mulf %143, %143 : vector<8x32xf32>
    %cst_56 = arith.constant dense<0.000000e+00> : vector<8xf32>
    %145 = vector.multi_reduction <add>, %144, %cst_56 [1] : vector<8x32xf32> to vector<8xf32>
    %146 = vector.shape_cast %145 : vector<8xf32> to vector<8x1xf32>
    %cst_57 = arith.constant 3.200000e+01 : f32
    %147 = vector.broadcast %cst_57 : f32 to vector<8x1xf32>
    %148 = arith.divf %146, %147 : vector<8x1xf32>
    %cst_58 = arith.constant 9.99999974E-6 : f32
    %149 = vector.broadcast %cst_58 : f32 to vector<8x1xf32>
    %150 = arith.addf %148, %149 : vector<8x1xf32>
    %151 = math.rsqrt %150 : vector<8x1xf32>
    %152 = vector.broadcast %151 : vector<8x1xf32> to vector<8x32xf32>
    %153 = arith.mulf %143, %152 : vector<8x32xf32>
    %154 = vector.broadcast %7 : vector<1x32xf32> to vector<8x32xf32>
    %155 = arith.mulf %153, %154 : vector<8x32xf32>
    %156 = vector.broadcast %8 : vector<1x32xf32> to vector<8x32xf32>
    %157 = arith.addf %155, %156 : vector<8x32xf32>
    %158 = arith.truncf %157 : vector<8x32xf32> to vector<8x32xbf16>
    %cst_59 = arith.constant dense<0.000000e+00> : vector<8x128xf32>
    %159 = tpu.matmul %158, %9, %cst_59 {dimension_numbers = #tpu.dot_dimension_numbers<[1], [0], [0], [1], [0, 0, 1, 1], [], []>} : vector<8x32xbf16>, vector<32x128xbf16>, vector<8x128xf32> -> vector<8x128xf32>
    %160 = vector.broadcast %10 : vector<1x128xf32> to vector<8x128xf32>
    %161 = arith.addf %159, %160 : vector<8x128xf32>
    %cst_60 = arith.constant 5.000000e-01 : f32
    %162 = vector.broadcast %cst_60 : f32 to vector<8x128xf32>
    %163 = arith.mulf %162, %161 : vector<8x128xf32>
    %cst_61 = arith.constant 4.471500e-02 : f32
    %164 = vector.broadcast %cst_61 : f32 to vector<8x128xf32>
    %165 = arith.mulf %164, %161 : vector<8x128xf32>
    %166 = arith.mulf %165, %161 : vector<8x128xf32>
    %167 = arith.mulf %166, %161 : vector<8x128xf32>
    %168 = arith.addf %161, %167 : vector<8x128xf32>
    %cst_62 = arith.constant 0.797884583 : f32
    %169 = vector.broadcast %cst_62 : f32 to vector<8x128xf32>
    %170 = arith.mulf %169, %168 : vector<8x128xf32>
    %171 = math.tanh %170 : vector<8x128xf32>
    %cst_63 = arith.constant 1.000000e+00 : f32
    %172 = vector.broadcast %cst_63 : f32 to vector<8x128xf32>
    %173 = arith.addf %172, %171 : vector<8x128xf32>
    %174 = arith.mulf %163, %173 : vector<8x128xf32>
    %175 = arith.truncf %174 : vector<8x128xf32> to vector<8x128xbf16>
    %cst_64 = arith.constant dense<0.000000e+00> : vector<8x32xf32>
    %176 = tpu.matmul %175, %11, %cst_64 {dimension_numbers = #tpu.dot_dimension_numbers<[1], [0], [0], [1], [0, 0, 1, 1], [], []>} : vector<8x128xbf16>, vector<128x32xbf16>, vector<8x32xf32> -> vector<8x32xf32>
    %177 = vector.broadcast %12 : vector<1x32xf32> to vector<8x32xf32>
    %178 = arith.addf %176, %177 : vector<8x32xf32>
    %179 = arith.addf %137, %178 : vector<8x32xf32>
    %180 = vector.shape_cast %179 : vector<8x32xf32> to vector<1x8x32xf32>
    %c0_65 = arith.constant 0 : index
    %c0_66 = arith.constant 0 : index
    %c0_67 = arith.constant 0 : index
    %181 = vector.load %arg14[%c0_65, %c0_66, %c0_67] : memref<1x8x32xf32, #tpu.memory_space<vmem>>, vector<1x8x32xf32>
    tpu.vector_store %arg14[%c0_65, %c0_66, %c0_67], %180 {strides = array<i32>} : memref<1x8x32xf32, #tpu.memory_space<vmem>>, vector<1x8x32xf32>,
    return
  }
  func.func @transform_0(%arg0: i32) -> (i32, i32, i32) {
    %c0_i32 = arith.constant 0 : i32
    %c0_i32_0 = arith.constant 0 : i32
    %c0_i32_1 = arith.constant 0 : i32
    return %arg0, %c0_i32, %c0_i32_0 : i32, i32, i32
  }
  func.func @transform_1(%arg0: i32) -> (i32, i32) {
    %c0_i32 = arith.constant 0 : i32
    %c0_i32_0 = arith.constant 0 : i32
    %c0_i32_1 = arith.constant 0 : i32
    return %c0_i32, %c0_i32_0 : i32, i32
  }
  func.func @transform_2(%arg0: i32) -> (i32, i32) {
    %c0_i32 = arith.constant 0 : i32
    %c0_i32_0 = arith.constant 0 : i32
    %c0_i32_1 = arith.constant 0 : i32
    return %c0_i32, %c0_i32_0 : i32, i32
  }
  func.func @transform_3(%arg0: i32) -> (i32, i32) {
    %c0_i32 = arith.constant 0 : i32
    %c0_i32_0 = arith.constant 0 : i32
    %c0_i32_1 = arith.constant 0 : i32
    return %c0_i32, %c0_i32_0 : i32, i32
  }
  func.func @transform_4(%arg0: i32) -> (i32, i32) {
    %c0_i32 = arith.constant 0 : i32
    %c0_i32_0 = arith.constant 0 : i32
    %c0_i32_1 = arith.constant 0 : i32
    return %c0_i32, %c0_i32_0 : i32, i32
  }
  func.func @transform_5(%arg0: i32) -> (i32, i32) {
    %c0_i32 = arith.constant 0 : i32
    %c0_i32_0 = arith.constant 0 : i32
    %c0_i32_1 = arith.constant 0 : i32
    return %c0_i32, %c0_i32_0 : i32, i32
  }
  func.func @transform_6(%arg0: i32) -> (i32, i32) {
    %c0_i32 = arith.constant 0 : i32
    %c0_i32_0 = arith.constant 0 : i32
    %c0_i32_1 = arith.constant 0 : i32
    return %c0_i32, %c0_i32_0 : i32, i32
  }
  func.func @transform_7(%arg0: i32) -> (i32, i32) {
    %c0_i32 = arith.constant 0 : i32
    %c0_i32_0 = arith.constant 0 : i32
    %c0_i32_1 = arith.constant 0 : i32
    return %c0_i32, %c0_i32_0 : i32, i32
  }
  func.func @transform_8(%arg0: i32) -> (i32, i32) {
    %c0_i32 = arith.constant 0 : i32
    %c0_i32_0 = arith.constant 0 : i32
    %c0_i32_1 = arith.constant 0 : i32
    return %c0_i32, %c0_i32_0 : i32, i32
  }
  func.func @transform_9(%arg0: i32) -> (i32, i32) {
    %c0_i32 = arith.constant 0 : i32
    %c0_i32_0 = arith.constant 0 : i32
    %c0_i32_1 = arith.constant 0 : i32
    return %c0_i32, %c0_i32_0 : i32, i32
  }
  func.func @transform_10(%arg0: i32) -> (i32, i32) {
    %c0_i32 = arith.constant 0 : i32
    %c0_i32_0 = arith.constant 0 : i32
    %c0_i32_1 = arith.constant 0 : i32
    return %c0_i32, %c0_i32_0 : i32, i32
  }
  func.func @transform_11(%arg0: i32) -> (i32, i32) {
    %c0_i32 = arith.constant 0 : i32
    %c0_i32_0 = arith.constant 0 : i32
    %c0_i32_1 = arith.constant 0 : i32
    return %c0_i32, %c0_i32_0 : i32, i32
  }
  func.func @transform_12(%arg0: i32) -> (i32, i32) {
    %c0_i32 = arith.constant 0 : i32
    %c0_i32_0 = arith.constant 0 : i32
    %c0_i32_1 = arith.constant 0 : i32
    return %c0_i32, %c0_i32_0 : i32, i32
  }
  func.func @transform_13(%arg0: i32) -> (i32, i32, i32) {
    %c0_i32 = arith.constant 0 : i32
    %c0_i32_0 = arith.constant 0 : i32
    %c0_i32_1 = arith.constant 0 : i32
    return %arg0, %c0_i32, %c0_i32_0 : i32, i32, i32
  }
}

</mosaic_0001>

<llo_original>
// kernel: tpu_custom_call.1
$region0: #{tpu_custom_call.1}
  #allocation0 [shape = 'u32[]', space=smem, size = 0x4, offset = 0x4, fixed_abs, tag = 'smem constant byte address 0x4 - core index']
  #allocation1 [shape = 'u32[144,128]{1,0:T(1,128)}', space=vmem, size = 0x12000, scoped, tag = 'internal scratch']
  %s0 = inlined_call_operand.vmem [shape: f32[2,8,32], index: 0, kind: input, shape index: {}]
  %s1 = inlined_call_operand.vmem [shape: f32[1,32], index: 1, kind: input, shape index: {}]
  %s2 = inlined_call_operand.vmem [shape: f32[1,32], index: 2, kind: input, shape index: {}]
  %s3 = inlined_call_operand.vmem [shape: bf16[32,96], index: 3, kind: input, shape index: {}]
  %s4 = inlined_call_operand.vmem [shape: f32[1,96], index: 4, kind: input, shape index: {}]
  %s5 = inlined_call_operand.vmem [shape: bf16[32,32], index: 5, kind: input, shape index: {}]
  %s6 = inlined_call_operand.vmem [shape: f32[1,32], index: 6, kind: input, shape index: {}]
  %s7 = inlined_call_operand.vmem [shape: f32[1,32], index: 7, kind: input, shape index: {}]
  %s8 = inlined_call_operand.vmem [shape: f32[1,32], index: 8, kind: input, shape index: {}]
  %s9 = inlined_call_operand.vmem [shape: bf16[32,128], index: 9, kind: input, shape index: {}]
  %s10 = inlined_call_operand.vmem [shape: f32[1,128], index: 10, kind: input, shape index: {}]
  %s11 = inlined_call_operand.vmem [shape: bf16[128,32], index: 11, kind: input, shape index: {}]
  %s12 = inlined_call_operand.vmem [shape: f32[1,32], index: 12, kind: input, shape index: {}]
  %s13 = inlined_call_operand.hbm [shape: f32[2,8,32], index: 13, kind: output, shape index: {}]
  %s14 = sld [smem:[#allocation0]]
  $region85: #{tpu_custom_call.1} parent=0
    _
  %s16 = ssub.s32 1, %s14
  %s17 = scalar_select 0, %s16, %s14
  $region1: #{tpu_custom_call.1} parent=0
    #allocation2 [shape = 'u8[8192]{0}', space=vmem, size = 0x2000, scoped, tag = 'output window, operand 0']
    #allocation3 [shape = 's32[2]{0}', space=sflag, size = 0x8, scoped, tag = 'scoped memory for tpu_custom_call.1']
    %18 = vsyncpa [#allocation3], 0
    %s19 = scalar_lea.sflag [#allocation3], 1
    %20 = vsyncpa %s19, 0
    loop: start=0, step=1, limit=4
    $region2: #{tpu_custom_call.1} parent=1 // loop_pre_header
      _
    $region3: #{tpu_custom_call.1} parent=1 // loop_header
      %s22 = sphi 0, %s26
      %p23 = scmp.ge.s32.totalorder %s22, 4
      %s32 = sphi 0, %s34
      %s35 = sphi 0, %s32
      %s36 = sphi 0, %s35
      %s52 = sphi 0, %s36
      %s56 = sphi 0, %s56
      %s58 = sphi 0, %s56
      %s59 = sphi 0, %s58
      %s73 = sphi 0, %s59
      %s77 = sphi 0, %s77
      %s79 = sphi 0, %s77
      %s80 = sphi 0, %s79
      %s94 = sphi 0, %s80
      %s98 = sphi 0, %s98
      %s100 = sphi 0, %s98
      %s101 = sphi 0, %s100
      %s115 = sphi 0, %s101
      %s119 = sphi 0, %s119
      %s121 = sphi 0, %s119
      %s122 = sphi 0, %s121
      %s136 = sphi 0, %s122
      %s140 = sphi 0, %s140
      %s142 = sphi 0, %s140
      %s143 = sphi 0, %s142
      %s157 = sphi 0, %s143
      %s161 = sphi 0, %s161
      %s163 = sphi 0, %s161
      %s164 = sphi 0, %s163
      %s178 = sphi 0, %s164
      %s182 = sphi 0, %s182
      %s184 = sphi 0, %s182
      %s185 = sphi 0, %s184
      %s199 = sphi 0, %s185
      %s203 = sphi 0, %s203
      %s205 = sphi 0, %s203
      %s206 = sphi 0, %s205
      %s220 = sphi 0, %s206
      %s224 = sphi 0, %s224
      %s226 = sphi 0, %s224
      %s227 = sphi 0, %s226
      %s241 = sphi 0, %s227
      %s245 = sphi 0, %s245
      %s247 = sphi 0, %s245
      %s248 = sphi 0, %s247
      %s262 = sphi 0, %s248
      %s266 = sphi 0, %s266
      %s268 = sphi 0, %s266
      %s269 = sphi 0, %s268
      %s283 = sphi 0, %s269
      %s287 = sphi 0, %s287
      %s289 = sphi 0, %s287
      %s290 = sphi 0, %s289
      %s304 = sphi 0, %s290
      %s310 = sphi 0, %s312
      %s313 = sphi 0, %s310
      %s314 = sphi 0, %s313
      %s330 = sphi 0, %s314
    $region4: #{tpu_custom_call.1} parent=1 // loop_header_branch
      %25 = sbr.rel (%p23) target = $region8
    $region5: #{tpu_custom_call.1} parent=1 // loop_body
      %s27 = ssub.s32 %s22, 1
      %s28 = ssub.s32 %s22, 2
      %s29 = sadd.s32 %s22, 1
      %s30 = ssub.s32 %s22, %s29
      %p31 = scmp.eq.s32.totalorder %s30, 0
      %s33 = sadd.s32 %s32, 1
      %s34 = scalar_select %p31, %s32, %s33
      %p37 = pneg %p31
      %p38 = scmp.eq.s32.totalorder %s22, 1
      %p39 = por %p37, %p38
      %p40 = scmp.ne.s32.totalorder %s32, %s35
      %p41 = scmp.eq.s32.totalorder %s22, 0
      %p42 = por %p40, %p41
      %p43 = scmp.ne.s32.totalorder %s32, %s35
      %p44 = scmp.eq.s32.totalorder %s27, 1
      %p45 = por %p43, %p44
      %p46 = scmp.ne.s32.totalorder %s35, %s36
      %p47 = scmp.eq.s32.totalorder %s27, 0
      %p48 = por %p46, %p47
      %p49 = scmp.ne.s32.totalorder %s35, %s36
      %p50 = scmp.eq.s32.totalorder %s28, 1
      %p51 = por %p49, %p50
      %p53 = scmp.ne.s32.totalorder %s36, %s52
      %p54 = scmp.eq.s32.totalorder %s28, 0
      %p55 = por %p53, %p54
      %s57 = sadd.s32 %s56, 1
      %p60 = scmp.eq.s32.totalorder %s22, 1
      %p61 = scmp.ne.s32.totalorder %s56, %s58
      %p62 = scmp.eq.s32.totalorder %s22, 0
      %p63 = por %p61, %p62
      %p64 = scmp.ne.s32.totalorder %s56, %s58
      %p65 = scmp.eq.s32.totalorder %s27, 1
      %p66 = por %p64, %p65
      %p67 = scmp.ne.s32.totalorder %s58, %s59
      %p68 = scmp.eq.s32.totalorder %s27, 0
      %p69 = por %p67, %p68
      %p70 = scmp.ne.s32.totalorder %s58, %s59
      %p71 = scmp.eq.s32.totalorder %s28, 1
      %p72 = por %p70, %p71
      %p74 = scmp.ne.s32.totalorder %s59, %s73
      %p75 = scmp.eq.s32.totalorder %s28, 0
      %p76 = por %p74, %p75
      %s78 = sadd.s32 %s77, 1
      %p81 = scmp.eq.s32.totalorder %s22, 1
      %p82 = scmp.ne.s32.totalorder %s77, %s79
      %p83 = scmp.eq.s32.totalorder %s22, 0
      %p84 = por %p82, %p83
      %p85 = scmp.ne.s32.totalorder %s77, %s79
      %p86 = scmp.eq.s32.totalorder %s27, 1
      %p87 = por %p85, %p86
      %p88 = scmp.ne.s32.totalorder %s79, %s80
      %p89 = scmp.eq.s32.totalorder %s27, 0
      %p90 = por %p88, %p89
      %p91 = scmp.ne.s32.totalorder %s79, %s80
      %p92 = scmp.eq.s32.totalorder %s28, 1
      %p93 = por %p91, %p92
      %p95 = scmp.ne.s32.totalorder %s80, %s94
      %p96 = scmp.eq.s32.totalorder %s28, 0
      %p97 = por %p95, %p96
      %s99 = sadd.s32 %s98, 1
      %p102 = scmp.eq.s32.totalorder %s22, 1
      %p103 = scmp.ne.s32.totalorder %s98, %s100
      %p104 = scmp.eq.s32.totalorder %s22, 0
      %p105 = por %p103, %p104
      %p106 = scmp.ne.s32.totalorder %s98, %s100
      %p107 = scmp.eq.s32.totalorder %s27, 1
      %p108 = por %p106, %p107
      %p109 = scmp.ne.s32.totalorder %s100, %s101
      %p110 = scmp.eq.s32.totalorder %s27, 0
      %p111 = por %p109, %p110
      %p112 = scmp.ne.s32.totalorder %s100, %s101
      %p113 = scmp.eq.s32.totalorder %s28, 1
      %p114 = por %p112, %p113
      %p116 = scmp.ne.s32.totalorder %s101, %s115
      %p117 = scmp.eq.s32.totalorder %s28, 0
      %p118 = por %p116, %p117
      %s120 = sadd.s32 %s119, 1
      %p123 = scmp.eq.s32.totalorder %s22, 1
      %p124 = scmp.ne.s32.totalorder %s119, %s121
      %p125 = scmp.eq.s32.totalorder %s22, 0
      %p126 = por %p124, %p125
      %p127 = scmp.ne.s32.totalorder %s119, %s121
      %p128 = scmp.eq.s32.totalorder %s27, 1
      %p129 = por %p127, %p128
      %p130 = scmp.ne.s32.totalorder %s121, %s122
      %p131 = scmp.eq.s32.totalorder %s27, 0
      %p132 = por %p130, %p131
      %p133 = scmp.ne.s32.totalorder %s121, %s122
      %p134 = scmp.eq.s32.totalorder %s28, 1
      %p135 = por %p133, %p134
      %p137 = scmp.ne.s32.totalorder %s122, %s136
      %p138 = scmp.eq.s32.totalorder %s28, 0
      %p139 = por %p137, %p138
      %s141 = sadd.s32 %s140, 1
      %p144 = scmp.eq.s32.totalorder %s22, 1
      %p145 = scmp.ne.s32.totalorder %s140, %s142
      %p146 = scmp.eq.s32.totalorder %s22, 0
      %p147 = por %p145, %p146
      %p148 = scmp.ne.s32.totalorder %s140, %s142
      %p149 = scmp.eq.s32.totalorder %s27, 1
      %p150 = por %p148, %p149
      %p151 = scmp.ne.s32.totalorder %s142, %s143
      %p152 = scmp.eq.s32.totalorder %s27, 0
      %p153 = por %p151, %p152
      %p154 = scmp.ne.s32.totalorder %s142, %s143
      %p155 = scmp.eq.s32.totalorder %s28, 1
      %p156 = por %p154, %p155
      %p158 = scmp.ne.s32.totalorder %s143, %s157
      %p159 = scmp.eq.s32.totalorder %s28, 0
      %p160 = por %p158, %p159
      %s162 = sadd.s32 %s161, 1
      %p165 = scmp.eq.s32.totalorder %s22, 1
      %p166 = scmp.ne.s32.totalorder %s161, %s163
      %p167 = scmp.eq.s32.totalorder %s22, 0
      %p168 = por %p166, %p167
      %p169 = scmp.ne.s32.totalorder %s161, %s163
      %p170 = scmp.eq.s32.totalorder %s27, 1
      %p171 = por %p169, %p170
      %p172 = scmp.ne.s32.totalorder %s163, %s164
      %p173 = scmp.eq.s32.totalorder %s27, 0
      %p174 = por %p172, %p173
      %p175 = scmp.ne.s32.totalorder %s163, %s164
      %p176 = scmp.eq.s32.totalorder %s28, 1
      %p177 = por %p175, %p176
      %p179 = scmp.ne.s32.totalorder %s164, %s178
      %p180 = scmp.eq.s32.totalorder %s28, 0
      %p181 = por %p179, %p180
      %s183 = sadd.s32 %s182, 1
      %p186 = scmp.eq.s32.totalorder %s22, 1
      %p187 = scmp.ne.s32.totalorder %s182, %s184
      %p188 = scmp.eq.s32.totalorder %s22, 0
      %p189 = por %p187, %p188
      %p190 = scmp.ne.s32.totalorder %s182, %s184
      %p191 = scmp.eq.s32.totalorder %s27, 1
      %p192 = por %p190, %p191
      %p193 = scmp.ne.s32.totalorder %s184, %s185
      %p194 = scmp.eq.s32.totalorder %s27, 0
      %p195 = por %p193, %p194
      %p196 = scmp.ne.s32.totalorder %s184, %s185
      %p197 = scmp.eq.s32.totalorder %s28, 1
      %p198 = por %p196, %p197
      %p200 = scmp.ne.s32.totalorder %s185, %s199
      %p201 = scmp.eq.s32.totalorder %s28, 0
      %p202 = por %p200, %p201
      %s204 = sadd.s32 %s203, 1
      %p207 = scmp.eq.s32.totalorder %s22, 1
      %p208 = scmp.ne.s32.totalorder %s203, %s205
      %p209 = scmp.eq.s32.totalorder %s22, 0
      %p210 = por %p208, %p209
      %p211 = scmp.ne.s32.totalorder %s203, %s205
      %p212 = scmp.eq.s32.totalorder %s27, 1
      %p213 = por %p211, %p212
      %p214 = scmp.ne.s32.totalorder %s205, %s206
      %p215 = scmp.eq.s32.totalorder %s27, 0
      %p216 = por %p214, %p215
      %p217 = scmp.ne.s32.totalorder %s205, %s206
      %p218 = scmp.eq.s32.totalorder %s28, 1
      %p219 = por %p217, %p218
      %p221 = scmp.ne.s32.totalorder %s206, %s220
      %p222 = scmp.eq.s32.totalorder %s28, 0
      %p223 = por %p221, %p222
      %s225 = sadd.s32 %s224, 1
      %p228 = scmp.eq.s32.totalorder %s22, 1
      %p229 = scmp.ne.s32.totalorder %s224, %s226
      %p230 = scmp.eq.s32.totalorder %s22, 0
      %p231 = por %p229, %p230
      %p232 = scmp.ne.s32.totalorder %s224, %s226
      %p233 = scmp.eq.s32.totalorder %s27, 1
      %p234 = por %p232, %p233
      %p235 = scmp.ne.s32.totalorder %s226, %s227
      %p236 = scmp.eq.s32.totalorder %s27, 0
      %p237 = por %p235, %p236
      %p238 = scmp.ne.s32.totalorder %s226, %s227
      %p239 = scmp.eq.s32.totalorder %s28, 1
      %p240 = por %p238, %p239
      %p242 = scmp.ne.s32.totalorder %s227, %s241
      %p243 = scmp.eq.s32.totalorder %s28, 0
      %p244 = por %p242, %p243
      %s246 = sadd.s32 %s245, 1
      %p249 = scmp.eq.s32.totalorder %s22, 1
      %p250 = scmp.ne.s32.totalorder %s245, %s247
      %p251 = scmp.eq.s32.totalorder %s22, 0
      %p252 = por %p250, %p251
      %p253 = scmp.ne.s32.totalorder %s245, %s247
      %p254 = scmp.eq.s32.totalorder %s27, 1
      %p255 = por %p253, %p254
      %p256 = scmp.ne.s32.totalorder %s247, %s248
      %p257 = scmp.eq.s32.totalorder %s27, 0
      %p258 = por %p256, %p257
      %p259 = scmp.ne.s32.totalorder %s247, %s248
      %p260 = scmp.eq.s32.totalorder %s28, 1
      %p261 = por %p259, %p260
      %p263 = scmp.ne.s32.totalorder %s248, %s262
      %p264 = scmp.eq.s32.totalorder %s28, 0
      %p265 = por %p263, %p264
      %s267 = sadd.s32 %s266, 1
      %p270 = scmp.eq.s32.totalorder %s22, 1
      %p271 = scmp.ne.s32.totalorder %s266, %s268
      %p272 = scmp.eq.s32.totalorder %s22, 0
      %p273 = por %p271, %p272
      %p274 = scmp.ne.s32.totalorder %s266, %s268
      %p275 = scmp.eq.s32.totalorder %s27, 1
      %p276 = por %p274, %p275
      %p277 = scmp.ne.s32.totalorder %s268, %s269
      %p278 = scmp.eq.s32.totalorder %s27, 0
      %p279 = por %p277, %p278
      %p280 = scmp.ne.s32.totalorder %s268, %s269
      %p281 = scmp.eq.s32.totalorder %s28, 1
      %p282 = por %p280, %p281
      %p284 = scmp.ne.s32.totalorder %s269, %s283
      %p285 = scmp.eq.s32.totalorder %s28, 0
      %p286 = por %p284, %p285
      %s288 = sadd.s32 %s287, 1
      %p291 = scmp.eq.s32.totalorder %s22, 1
      %p292 = scmp.ne.s32.totalorder %s287, %s289
      %p293 = scmp.eq.s32.totalorder %s22, 0
      %p294 = por %p292, %p293
      %p295 = scmp.ne.s32.totalorder %s287, %s289
      %p296 = scmp.eq.s32.totalorder %s27, 1
      %p297 = por %p295, %p296
      %p298 = scmp.ne.s32.totalorder %s289, %s290
      %p299 = scmp.eq.s32.totalorder %s27, 0
      %p300 = por %p298, %p299
      %p301 = scmp.ne.s32.totalorder %s289, %s290
      %p302 = scmp.eq.s32.totalorder %s28, 1
      %p303 = por %p301, %p302
      %p305 = scmp.ne.s32.totalorder %s290, %s304
      %p306 = scmp.eq.s32.totalorder %s28, 0
      %p307 = por %p305, %p306
      %s308 = ssub.s32 %s22, %s29
      %p309 = scmp.eq.s32.totalorder %s308, 0
      %s311 = sadd.s32 %s310, 1
      %s312 = scalar_select %p309, %s310, %s311
      %p315 = pneg %p309
      %p316 = scmp.eq.s32.totalorder %s22, 1
      %p317 = por %p315, %p316
      %p318 = scmp.ne.s32.totalorder %s310, %s313
      %p319 = scmp.eq.s32.totalorder %s22, 0
      %p320 = por %p318, %p319
      %p321 = scmp.ne.s32.totalorder %s310, %s313
      %p322 = scmp.eq.s32.totalorder %s27, 1
      %p323 = por %p321, %p322
      %p324 = scmp.ne.s32.totalorder %s313, %s314
      %p325 = scmp.eq.s32.totalorder %s27, 0
      %p326 = por %p324, %p325
      %p327 = scmp.ne.s32.totalorder %s313, %s314
      %p328 = scmp.eq.s32.totalorder %s28, 1
      %p329 = por %p327, %p328
      %p331 = scmp.ne.s32.totalorder %s314, %s330
      %p332 = scmp.eq.s32.totalorder %s28, 0
      %p333 = por %p331, %p332
      %p334 = scmp.le.s32.totalorder 1, %s22
      %p335 = scmp.lt.s32.totalorder %s22, 3
      %p336 = pnand %p334, %p335
      %p337 = pneg %p336
      // Predicated region
      $region9: #{tpu_custom_call.1} parent=5 // pred_check
        _
      $region10: #{tpu_custom_call.1} parent=5 // pred_check_branch
        %339 = sbr.rel (%p336) target = $region12
      $region11: #{tpu_custom_call.1} parent=5 // pred_region
        %s340 = ssub.s32 %s22, 1
        // Predicated region
        $region13: #{tpu_custom_call.1} parent=11 // pred_check
          %p341 = pneg %p69
        $region14: #{tpu_custom_call.1} parent=11 // pred_check_branch
          %343 = sbr.rel (%p341) target = $region16
        $region15: #{tpu_custom_call.1} parent=11 // pred_region
          _
        $region16: #{tpu_custom_call.1} parent=11 // pred_fallthru
          _
        // Predicated region
        $region17: #{tpu_custom_call.1} parent=11 // pred_check
          %p344 = pneg %p90
        $region18: #{tpu_custom_call.1} parent=11 // pred_check_branch
          %346 = sbr.rel (%p344) target = $region20
        $region19: #{tpu_custom_call.1} parent=11 // pred_region
          _
        $region20: #{tpu_custom_call.1} parent=11 // pred_fallthru
          _
        // Predicated region
        $region21: #{tpu_custom_call.1} parent=11 // pred_check
          %p347 = pneg %p111
        $region22: #{tpu_custom_call.1} parent=11 // pred_check_branch
          %349 = sbr.rel (%p347) target = $region24
        $region23: #{tpu_custom_call.1} parent=11 // pred_region
          _
        $region24: #{tpu_custom_call.1} parent=11 // pred_fallthru
          _
        // Predicated region
        $region25: #{tpu_custom_call.1} parent=11 // pred_check
          %p350 = pneg %p132
        $region26: #{tpu_custom_call.1} parent=11 // pred_check_branch
          %352 = sbr.rel (%p350) target = $region28
        $region27: #{tpu_custom_call.1} parent=11 // pred_region
          _
        $region28: #{tpu_custom_call.1} parent=11 // pred_fallthru
          _
        // Predicated region
        $region29: #{tpu_custom_call.1} parent=11 // pred_check
          %p353 = pneg %p153
        $region30: #{tpu_custom_call.1} parent=11 // pred_check_branch
          %355 = sbr.rel (%p353) target = $region32
        $region31: #{tpu_custom_call.1} parent=11 // pred_region
          _
        $region32: #{tpu_custom_call.1} parent=11 // pred_fallthru
          _
        // Predicated region
        $region33: #{tpu_custom_call.1} parent=11 // pred_check
          %p356 = pneg %p174
        $region34: #{tpu_custom_call.1} parent=11 // pred_check_branch
          %358 = sbr.rel (%p356) target = $region36
        $region35: #{tpu_custom_call.1} parent=11 // pred_region
          _
        $region36: #{tpu_custom_call.1} parent=11 // pred_fallthru
          _
        // Predicated region
        $region37: #{tpu_custom_call.1} parent=11 // pred_check
          %p359 = pneg %p195
        $region38: #{tpu_custom_call.1} parent=11 // pred_check_branch
          %361 = sbr.rel (%p359) target = $region40
        $region39: #{tpu_custom_call.1} parent=11 // pred_region
          _
        $region40: #{tpu_custom_call.1} parent=11 // pred_fallthru
          _
        // Predicated region
        $region41: #{tpu_custom_call.1} parent=11 // pred_check
          %p362 = pneg %p216
        $region42: #{tpu_custom_call.1} parent=11 // pred_check_branch
          %364 = sbr.rel (%p362) target = $region44
        $region43: #{tpu_custom_call.1} parent=11 // pred_region
          _
        $region44: #{tpu_custom_call.1} parent=11 // pred_fallthru
          _
        // Predicated region
        $region45: #{tpu_custom_call.1} parent=11 // pred_check
          %p365 = pneg %p237
        $region46: #{tpu_custom_call.1} parent=11 // pred_check_branch
          %367 = sbr.rel (%p365) target = $region48
        $region47: #{tpu_custom_call.1} parent=11 // pred_region
          _
        $region48: #{tpu_custom_call.1} parent=11 // pred_fallthru
          _
        // Predicated region
        $region49: #{tpu_custom_call.1} parent=11 // pred_check
          %p368 = pneg %p258
        $region50: #{tpu_custom_call.1} parent=11 // pred_check_branch
          %370 = sbr.rel (%p368) target = $region52
        $region51: #{tpu_custom_call.1} parent=11 // pred_region
          _
        $region52: #{tpu_custom_call.1} parent=11 // pred_fallthru
          _
        // Predicated region
        $region53: #{tpu_custom_call.1} parent=11 // pred_check
          %p371 = pneg %p279
        $region54: #{tpu_custom_call.1} parent=11 // pred_check_branch
          %373 = sbr.rel (%p371) target = $region56
        $region55: #{tpu_custom_call.1} parent=11 // pred_region
          _
        $region56: #{tpu_custom_call.1} parent=11 // pred_fallthru
          _
        // Predicated region
        $region57: #{tpu_custom_call.1} parent=11 // pred_check
          %p374 = pneg %p300
        $region58: #{tpu_custom_call.1} parent=11 // pred_check_branch
          %376 = sbr.rel (%p374) target = $region60
        $region59: #{tpu_custom_call.1} parent=11 // pred_region
          _
        $region60: #{tpu_custom_call.1} parent=11 // pred_fallthru
          _
      $region12: #{tpu_custom_call.1} parent=5 // pred_fallthru
        _
      %p377 = scmp.lt.s32.totalorder %s22, 2
      // Predicated region
      $region61: #{tpu_custom_call.1} parent=5 // pred_check
        %p378 = pneg %p377
      $region62: #{tpu_custom_call.1} parent=5 // pred_check_branch
        %380 = sbr.rel (%p378) target = $region64
      $region63: #{tpu_custom_call.1} parent=5 // pred_region
        // Predicated region
        $region65: #{tpu_custom_call.1} parent=63 // pred_check
          %p381 = pneg %p42
        $region66: #{tpu_custom_call.1} parent=63 // pred_check_branch
          %383 = sbr.rel (%p381) target = $region68
        $region67: #{tpu_custom_call.1} parent=63 // pred_region
          %p384 = scmp.lt.s32.totalorder %s22, 1
          %s385 = scalar_select %p384, %s22, 1
          %s386 = smul.addr %s385, 8
          %s387 = scalar_lea.vmem %s0, %s386
        $region68: #{tpu_custom_call.1} parent=63 // pred_fallthru
          _
      $region64: #{tpu_custom_call.1} parent=5 // pred_fallthru
        _
      %p388 = scmp.le.s32.totalorder 1, %s22
      %p389 = scmp.lt.s32.totalorder %s22, 3
      %p390 = pnand %p388, %p389
      %p391 = pneg %p390
      // Predicated region
      $region69: #{tpu_custom_call.1} parent=5 // pred_check
        _
      $region70: #{tpu_custom_call.1} parent=5 // pred_check_branch
        %393 = sbr.rel (%p390) target = $region72
      $region71: #{tpu_custom_call.1} parent=5 // pred_region
        %s394 = ssub.s32 %s22, 1
        %p395 = scmp.lt.s32.totalorder %s27, 1
        %s396 = scalar_select %p395, %s27, 1
        %s397 = smul.addr %s396, 8
        %s398 = scalar_lea.vmem %s0, %s397
        %p399 = pneg %p48
        %p400 = pneg %p45
        %p401 = pneg %p69
        %p402 = pneg %p66
        %p403 = pneg %p90
        %p404 = pneg %p87
        %p405 = pneg %p111
        %p406 = pneg %p108
        %p407 = pneg %p132
        %p408 = pneg %p129
        %p409 = pneg %p153
        %p410 = pneg %p150
        %p411 = pneg %p174
        %p412 = pneg %p171
        %p413 = pneg %p195
        %p414 = pneg %p192
        %p415 = pneg %p216
        %p416 = pneg %p213
        %p417 = pneg %p237
        %p418 = pneg %p234
        %p419 = pneg %p258
        %p420 = pneg %p255
        %p421 = pneg %p279
        %p422 = pneg %p276
        %p423 = pneg %p300
        %p424 = pneg %p297
        %p425 = pneg %p326
        %p426 = pneg %p323
        %s427 = sand.u32 %s313, 1
        %s428 = scalar_lea.sflag [#allocation3], %s427
        %s429 = sand.u32 %s313, 1
        %s430 = smul.addr %s429, 8
        %s431 = scalar_lea.vmem [#allocation2], %s430
        %p432 = scmp.lt.s32.totalorder %s27, 1
        %s433 = scalar_select %p432, %s27, 1
        %s434 = smul.addr %s433, 8
        %s435 = scalar_lea.vmem %s0, %s434
        %v437 = vld [vmem:[%s435] sm:$0xff]
        %v438 = vld [vmem:[%s1] sm:$0x1]
        %v439 = vld [vmem:[%s2] sm:$0x1]
        %v440 = vld [vmem:[%s3] sm:$0xf]
        %v441 = vld [vmem:[%s3 + $0x4] sm:$0xf]
        %v442 = vld [vmem:[%s3 + $0x8] sm:$0xf]
        %v443 = vld [vmem:[%s3 + $0xc] sm:$0xf]
        %v444 = vld [vmem:[%s4] sm:$0x1]
        %v445 = vld [vmem:[%s5] sm:$0xf]
        %v446 = vld [vmem:[%s5 + $0x4] sm:$0xf]
        %v447 = vld [vmem:[%s5 + $0x8] sm:$0xf]
        %v448 = vld [vmem:[%s5 + $0xc] sm:$0xf]
        %v449 = vld [vmem:[%s6] sm:$0x1]
        %v450 = vld [vmem:[%s7] sm:$0x1]
        %v451 = vld [vmem:[%s8] sm:$0x1]
        %v452 = vld [vmem:[%s9] sm:$0xf]
        %v453 = vld [vmem:[%s9 + $0x4] sm:$0xf]
        %v454 = vld [vmem:[%s9 + $0x8] sm:$0xf]
        %v455 = vld [vmem:[%s9 + $0xc] sm:$0xf]
        %v456 = vld [vmem:[%s10] sm:$0x1]
        %v457 = vld [vmem:[%s11] sm:$0xf]
        %v458 = vld [vmem:[%s11 + $0x4] sm:$0xf]
        %v459 = vld [vmem:[%s11 + $0x8] sm:$0xf]
        %v460 = vld [vmem:[%s11 + $0xc] sm:$0xf]
        %v461 = vld [vmem:[%s11 + $0x10] sm:$0xf]
        %v462 = vld [vmem:[%s11 + $0x14] sm:$0xf]
        %v463 = vld [vmem:[%s11 + $0x18] sm:$0xf]
        %v464 = vld [vmem:[%s11 + $0x1c] sm:$0xf]
        %v465 = vld [vmem:[%s11 + $0x20] sm:$0xf]
        %v466 = vld [vmem:[%s11 + $0x24] sm:$0xf]
        %v467 = vld [vmem:[%s11 + $0x28] sm:$0xf]
        %v468 = vld [vmem:[%s11 + $0x2c] sm:$0xf]
        %v469 = vld [vmem:[%s11 + $0x30] sm:$0xf]
        %v470 = vld [vmem:[%s11 + $0x34] sm:$0xf]
        %v471 = vld [vmem:[%s11 + $0x38] sm:$0xf]
        %v472 = vld [vmem:[%s11 + $0x3c] sm:$0xf]
        %v473 = vld [vmem:[%s12] sm:$0x1]
        %vm474 = vcmask 261120
        %v475 = vsel %vm474, %v437, 0.0
        %476 = vadd.xlane.f32.xlu0 %v475
        %v477 = vpop.xlane.xlu0 %476
        %v478 = vrcp.pop 32.0
        %v479 = vmul.f32 %v477, %v478
        %v480 = vsub.f32 %v437, %v479
        %v481 = vmul.f32 %v480, %v480
        %v482 = vsel %vm474, %v481, 0.0
        %483 = vadd.xlane.f32.xlu0 %v482
        %v484 = vpop.xlane.xlu0 %483
        %v485 = vmul.f32 %v484, %v478
        %v486 = vadd.f32 %v485, 1e-05
        %v487 = vrsqrt.pop %v486
        %v488 = vmul.f32 %v480, %v487
        %v490 = vlaneseq
        %v491 = vshrl.u32 %v490, 7
        %v492 = vsub.s32 0, %v491
        %v493 = vrot.slane %v438, %v492
        %v495 = vmul.f32 %v488, %v493
        %v497 = vlaneseq
        %v498 = vshrl.u32 %v497, 7
        %v499 = vsub.s32 0, %v498
        %v500 = vrot.slane %v439, %v499
        %v502 = vadd.f32 %v495, %v500
        %v503 = vpack.c.bf16 %v502, %v502
        %v505 = vlaneseq
        %v506 = vshrl.u32 %v505, 7
        %v507 = vsub.s32 0, %v506
        %v508 = vrot.slane %v444, %v507
        %v514 = vunpack.c.l.b16 %v440
        %v515 = vunpack.c.l.b16 %v441
        %v516 = vunpack.c.l.b16 %v442
        %v517 = vunpack.c.l.b16 %v443
        %v518 = vpack.c.b16 %v515, %v514
        %v519 = vpack.c.b16 %v517, %v516
        %v523 = vsel %vm474, %v503, 0
        %525 = vmatprep.subr.bf16.mxu0 0
        %526 = vmatpush1.bf16.msra.mxu0 %v518
        %527 = vmatprep.subr.bf16.mxu0 0
        %528 = vmatpush1.bf16.msra.mxu0 %v519
        %529 = vmatprep.subr.bf16.mxu0 0
        %530 = vmatpush1.bf16.msra.mxu0 0
        %531 = vmatprep.subr.bf16.mxu0 0
        %532 = vmatpush1.bf16.msra.mxu0 0
        %533 = vmatprep.subr.bf16.mxu0 0
        %534 = vmatpush1.bf16.msra.mxu0 0
        %535 = vmatprep.subr.bf16.mxu0 0
        %536 = vmatpush1.bf16.msra.mxu0 0
        %537 = vmatprep.subr.bf16.mxu0 0
        %538 = vmatpush1.bf16.msra.mxu0 0
        %539 = vmatprep.subr.bf16.mxu0 0
        %540 = vmatpush1.bf16.msra.mxu0 0
        %541 = vmatprep.subr.bf16.mxu0 0
        %542 = vmatpush1.bf16.msra.mxu0 0
        %543 = vmatprep.subr.bf16.mxu0 0
        %544 = vmatpush1.bf16.msra.mxu0 0
        %545 = vmatprep.subr.bf16.mxu0 0
        %546 = vmatpush1.bf16.msra.mxu0 0
        %547 = vmatprep.subr.bf16.mxu0 0
        %548 = vmatpush1.bf16.msra.mxu0 0
        %549 = vmatprep.subr.bf16.mxu0 0
        %550 = vmatpush1.bf16.msra.mxu0 0
        %551 = vmatprep.subr.bf16.mxu0 0
        %552 = vmatpush1.bf16.msra.mxu0 0
        %553 = vmatprep.subr.bf16.mxu0 0
        %554 = vmatpush1.bf16.msra.mxu0 0
        %555 = vmatprep.subr.bf16.mxu0 0
        %556 = vmatpush1.bf16.msra.mxu0 0
        %557 = vmatprep.mubr.bf16.mxu0 0
        %558 = vmatmul.mubr.bf16.gmra.mrb[0].mxu0 %v523
        %v559 = vpop.f32.mrb[0].mxu0
        %v560 = vadd.f32 %v508, %v559
        %v561 = vpop.f32.mrb[0].mxu0
        %v562 = vpop.f32.mrb[0].mxu0
        %v563 = vpop.f32.mrb[0].mxu0
        %564 = vdwg.mxu0
        %v565 = vlaneseq
        %v566 = vshrl.u32 %v565, 7
        %v567 = vlaneseq
        %v568 = vand.u32 %v567, 127
        %vm569 = vcmp.ge.s32.totalorder %v566, %v568
        %v570 = vsel %vm569, 0.0, -1e+30
        %v571 = vmul.f32 %v560, 0.35355338
        %v572 = vpack.c.bf16 %v571, %v571
        %v573 = vpack.c.bf16 %v560, %v560
        %575 = vrot.lane.b32.xlu0 %v573, 96
        %v576 = vpop.permute.xlu0 %575
        %vm577 = vcmask 64512
        %v579 = vsel %vm577, %v572, 0
        %v582 = vsel %vm577, %v576, 0
        %584 = vmatprep.subr.bf16.mxu0 0
        %585 = vmatpush1.bf16.xpose.msra.mxu0 %v582
        %586 = vmatprep.subr.bf16.mxu0 0
        %587 = vmatpush1.bf16.xpose.msra.mxu0 0
        %588 = vmatprep.subr.bf16.mxu0 0
        %589 = vmatpush1.bf16.xpose.msra.mxu0 0
        %590 = vmatprep.subr.bf16.mxu0 0
        %591 = vmatpush1.bf16.xpose.msra.mxu0 0
        %592 = vmatprep.subr.bf16.mxu0 0
        %593 = vmatpush1.bf16.xpose.msra.mxu0 0
        %594 = vmatprep.subr.bf16.mxu0 0
        %595 = vmatpush1.bf16.xpose.msra.mxu0 0
        %596 = vmatprep.subr.bf16.mxu0 0
        %597 = vmatpush1.bf16.xpose.msra.mxu0 0
        %598 = vmatprep.subr.bf16.mxu0 0
        %599 = vmatpush1.bf16.xpose.msra.mxu0 0
        %600 = vmatprep.subr.bf16.mxu0 0
        %601 = vmatpush1.bf16.xpose.msra.mxu0 0
        %602 = vmatprep.subr.bf16.mxu0 0
        %603 = vmatpush1.bf16.xpose.msra.mxu0 0
        %604 = vmatprep.subr.bf16.mxu0 0
        %605 = vmatpush1.bf16.xpose.msra.mxu0 0
        %606 = vmatprep.subr.bf16.mxu0 0
        %607 = vmatpush1.bf16.xpose.msra.mxu0 0
        %608 = vmatprep.subr.bf16.mxu0 0
        %609 = vmatpush1.bf16.xpose.msra.mxu0 0
        %610 = vmatprep.subr.bf16.mxu0 0
        %611 = vmatpush1.bf16.xpose.msra.mxu0 0
        %612 = vmatprep.subr.bf16.mxu0 0
        %613 = vmatpush1.bf16.xpose.msra.mxu0 0
        %614 = vmatprep.subr.bf16.mxu0 0
        %615 = vmatpush1.bf16.xpose.msra.mxu0 0
        %616 = vmatprep.mubr.bf16.mxu0 0
        %617 = vmatmul.mubr.bf16.gmra.mrb[0].mxu0 %v579
        %v618 = vpop.f32.mrb[0].mxu0
        %v619 = vadd.f32 %v570, %v618
        %v620 = vpop.f32.mrb[0].mxu0
        %v621 = vpop.f32.mrb[0].mxu0
        %v622 = vpop.f32.mrb[0].mxu0
        %623 = vdwg.mxu0
        %v624 = vsel %vm577, %v619, -inf
        %625 = vmax.xlane.f32.xlu0 %v624
        %v626 = vpop.xlane.xlu0 %625
        %v627 = vsub.f32 %v619, %v626
        %v628 = vmul.f32 %v627, 1.442695
        %v629 = vpow.pop %v628
        %v630 = vsel %vm577, %v629, 0.0
        %631 = vadd.xlane.f32.xlu0 %v630
        %v632 = vpop.xlane.xlu0 %631
        %v633 = vrcp.pop %v632
        %v634 = vmul.f32 %v629, %v633
        %v635 = vpack.c.bf16 %v634, %v634
        %636 = vrot.lane.b32.xlu0 %v573, 64
        %v637 = vpop.permute.xlu0 %636
        %v639 = vsel %vm577, %v635, 0
        %vm641 = vcmask 1043456
        %v643 = vsel %vm641, %v637, 0
        %645 = vmatprep.subr.bf16.mxu0 0
        %646 = vmatpush1.bf16.msra.mxu0 %v643
        %647 = vmatprep.subr.bf16.mxu0 0
        %648 = vmatpush1.bf16.msra.mxu0 0
        %649 = vmatprep.subr.bf16.mxu0 0
        %650 = vmatpush1.bf16.msra.mxu0 0
        %651 = vmatprep.subr.bf16.mxu0 0
        %652 = vmatpush1.bf16.msra.mxu0 0
        %653 = vmatprep.subr.bf16.mxu0 0
        %654 = vmatpush1.bf16.msra.mxu0 0
        %655 = vmatprep.subr.bf16.mxu0 0
        %656 = vmatpush1.bf16.msra.mxu0 0
        %657 = vmatprep.subr.bf16.mxu0 0
        %658 = vmatpush1.bf16.msra.mxu0 0
        %659 = vmatprep.subr.bf16.mxu0 0
        %660 = vmatpush1.bf16.msra.mxu0 0
        %661 = vmatprep.subr.bf16.mxu0 0
        %662 = vmatpush1.bf16.msra.mxu0 0
        %663 = vmatprep.subr.bf16.mxu0 0
        %664 = vmatpush1.bf16.msra.mxu0 0
        %665 = vmatprep.subr.bf16.mxu0 0
        %666 = vmatpush1.bf16.msra.mxu0 0
        %667 = vmatprep.subr.bf16.mxu0 0
        %668 = vmatpush1.bf16.msra.mxu0 0
        %669 = vmatprep.subr.bf16.mxu0 0
        %670 = vmatpush1.bf16.msra.mxu0 0
        %671 = vmatprep.subr.bf16.mxu0 0
        %672 = vmatpush1.bf16.msra.mxu0 0
        %673 = vmatprep.subr.bf16.mxu0 0
        %674 = vmatpush1.bf16.msra.mxu0 0
        %675 = vmatprep.subr.bf16.mxu0 0
        %676 = vmatpush1.bf16.msra.mxu0 0
        %677 = vmatprep.mubr.bf16.mxu0 0
        %678 = vmatmul.mubr.bf16.gmra.mrb[0].mxu0 %v639
        %v679 = vpop.f32.mrb[0].mxu0
        %v680 = vadd.f32 0.0, %v679
        %v681 = vpop.f32.mrb[0].mxu0
        %v682 = vpop.f32.mrb[0].mxu0
        %v683 = vpop.f32.mrb[0].mxu0
        %684 = vdwg.mxu0
        %686 = vrot.lane.b32.xlu0 %v572, 120
        %v687 = vpop.permute.xlu0 %686
        %688 = vrot.lane.b32.xlu0 %v573, 88
        %v689 = vpop.permute.xlu0 %688
        %v691 = vsel %vm577, %v687, 0
        %v694 = vsel %vm577, %v689, 0
        %696 = vmatprep.subr.bf16.mxu0 0
        %697 = vmatpush1.bf16.xpose.msra.mxu0 %v694
        %698 = vmatprep.subr.bf16.mxu0 0
        %699 = vmatpush1.bf16.xpose.msra.mxu0 0
        %700 = vmatprep.subr.bf16.mxu0 0
        %701 = vmatpush1.bf16.xpose.msra.mxu0 0
        %702 = vmatprep.subr.bf16.mxu0 0
        %703 = vmatpush1.bf16.xpose.msra.mxu0 0
        %704 = vmatprep.subr.bf16.mxu0 0
        %705 = vmatpush1.bf16.xpose.msra.mxu0 0
        %706 = vmatprep.subr.bf16.mxu0 0
        %707 = vmatpush1.bf16.xpose.msra.mxu0 0
        %708 = vmatprep.subr.bf16.mxu0 0
        %709 = vmatpush1.bf16.xpose.msra.mxu0 0
        %710 = vmatprep.subr.bf16.mxu0 0
        %711 = vmatpush1.bf16.xpose.msra.mxu0 0
        %712 = vmatprep.subr.bf16.mxu0 0
        %713 = vmatpush1.bf16.xpose.msra.mxu0 0
        %714 = vmatprep.subr.bf16.mxu0 0
        %715 = vmatpush1.bf16.xpose.msra.mxu0 0
        %716 = vmatprep.subr.bf16.mxu0 0
        %717 = vmatpush1.bf16.xpose.msra.mxu0 0
        %718 = vmatprep.subr.bf16.mxu0 0
        %719 = vmatpush1.bf16.xpose.msra.mxu0 0
        %720 = vmatprep.subr.bf16.mxu0 0
        %721 = vmatpush1.bf16.xpose.msra.mxu0 0
        %722 = vmatprep.subr.bf16.mxu0 0
        %723 = vmatpush1.bf16.xpose.msra.mxu0 0
        %724 = vmatprep.subr.bf16.mxu0 0
        %725 = vmatpush1.bf16.xpose.msra.mxu0 0
        %726 = vmatprep.subr.bf16.mxu0 0
        %727 = vmatpush1.bf16.xpose.msra.mxu0 0
        %728 = vmatprep.mubr.bf16.mxu0 0
        %729 = vmatmul.mubr.bf16.gmra.mrb[0].mxu0 %v691
        %v730 = vpop.f32.mrb[0].mxu0
        %v731 = vadd.f32 %v570, %v730
        %v732 = vpop.f32.mrb[0].mxu0
        %v733 = vpop.f32.mrb[0].mxu0
        %v734 = vpop.f32.mrb[0].mxu0
        %735 = vdwg.mxu0
        %v736 = vsel %vm577, %v731, -inf
        %737 = vmax.xlane.f32.xlu0 %v736
        %v738 = vpop.xlane.xlu0 %737
        %v739 = vsub.f32 %v731, %v738
        %v740 = vmul.f32 %v739, 1.442695
        %v741 = vpow.pop %v740
        %v742 = vsel %vm577, %v741, 0.0
        %743 = vadd.xlane.f32.xlu0 %v742
        %v744 = vpop.xlane.xlu0 %743
        %v745 = vrcp.pop %v744
        %v746 = vmul.f32 %v741, %v745
        %v747 = vpack.c.bf16 %v746, %v746
        %748 = vrot.lane.b32.xlu0 %v573, 56
        %v749 = vpop.permute.xlu0 %748
        %v751 = vsel %vm577, %v747, 0
        %v754 = vsel %vm641, %v749, 0
        %756 = vmatprep.subr.bf16.mxu0 0
        %757 = vmatpush1.bf16.msra.mxu0 %v754
        %758 = vmatprep.subr.bf16.mxu0 0
        %759 = vmatpush1.bf16.msra.mxu0 0
        %760 = vmatprep.subr.bf16.mxu0 0
        %761 = vmatpush1.bf16.msra.mxu0 0
        %762 = vmatprep.subr.bf16.mxu0 0
        %763 = vmatpush1.bf16.msra.mxu0 0
        %764 = vmatprep.subr.bf16.mxu0 0
        %765 = vmatpush1.bf16.msra.mxu0 0
        %766 = vmatprep.subr.bf16.mxu0 0
        %767 = vmatpush1.bf16.msra.mxu0 0
        %768 = vmatprep.subr.bf16.mxu0 0
        %769 = vmatpush1.bf16.msra.mxu0 0
        %770 = vmatprep.subr.bf16.mxu0 0
        %771 = vmatpush1.bf16.msra.mxu0 0
        %772 = vmatprep.subr.bf16.mxu0 0
        %773 = vmatpush1.bf16.msra.mxu0 0
        %774 = vmatprep.subr.bf16.mxu0 0
        %775 = vmatpush1.bf16.msra.mxu0 0
        %776 = vmatprep.subr.bf16.mxu0 0
        %777 = vmatpush1.bf16.msra.mxu0 0
        %778 = vmatprep.subr.bf16.mxu0 0
        %779 = vmatpush1.bf16.msra.mxu0 0
        %780 = vmatprep.subr.bf16.mxu0 0
        %781 = vmatpush1.bf16.msra.mxu0 0
        %782 = vmatprep.subr.bf16.mxu0 0
        %783 = vmatpush1.bf16.msra.mxu0 0
        %784 = vmatprep.subr.bf16.mxu0 0
        %785 = vmatpush1.bf16.msra.mxu0 0
        %786 = vmatprep.subr.bf16.mxu0 0
        %787 = vmatpush1.bf16.msra.mxu0 0
        %788 = vmatprep.mubr.bf16.mxu0 0
        %789 = vmatmul.mubr.bf16.gmra.mrb[0].mxu0 %v751
        %v790 = vpop.f32.mrb[0].mxu0
        %v791 = vadd.f32 0.0, %v790
        %v792 = vpop.f32.mrb[0].mxu0
        %v793 = vpop.f32.mrb[0].mxu0
        %v794 = vpop.f32.mrb[0].mxu0
        %795 = vdwg.mxu0
        %796 = vrot.lane.b32.xlu0 %v572, 112
        %v797 = vpop.permute.xlu0 %796
        %798 = vrot.lane.b32.xlu0 %v573, 80
        %v799 = vpop.permute.xlu0 %798
        %v801 = vsel %vm577, %v797, 0
        %v804 = vsel %vm577, %v799, 0
        %806 = vmatprep.subr.bf16.mxu0 0
        %807 = vmatpush1.bf16.xpose.msra.mxu0 %v804
        %808 = vmatprep.subr.bf16.mxu0 0
        %809 = vmatpush1.bf16.xpose.msra.mxu0 0
        %810 = vmatprep.subr.bf16.mxu0 0
        %811 = vmatpush1.bf16.xpose.msra.mxu0 0
        %812 = vmatprep.subr.bf16.mxu0 0
        %813 = vmatpush1.bf16.xpose.msra.mxu0 0
        %814 = vmatprep.subr.bf16.mxu0 0
        %815 = vmatpush1.bf16.xpose.msra.mxu0 0
        %816 = vmatprep.subr.bf16.mxu0 0
        %817 = vmatpush1.bf16.xpose.msra.mxu0 0
        %818 = vmatprep.subr.bf16.mxu0 0
        %819 = vmatpush1.bf16.xpose.msra.mxu0 0
        %820 = vmatprep.subr.bf16.mxu0 0
        %821 = vmatpush1.bf16.xpose.msra.mxu0 0
        %822 = vmatprep.subr.bf16.mxu0 0
        %823 = vmatpush1.bf16.xpose.msra.mxu0 0
        %824 = vmatprep.subr.bf16.mxu0 0
        %825 = vmatpush1.bf16.xpose.msra.mxu0 0
        %826 = vmatprep.subr.bf16.mxu0 0
        %827 = vmatpush1.bf16.xpose.msra.mxu0 0
        %828 = vmatprep.subr.bf16.mxu0 0
        %829 = vmatpush1.bf16.xpose.msra.mxu0 0
        %830 = vmatprep.subr.bf16.mxu0 0
        %831 = vmatpush1.bf16.xpose.msra.mxu0 0
        %832 = vmatprep.subr.bf16.mxu0 0
        %833 = vmatpush1.bf16.xpose.msra.mxu0 0
        %834 = vmatprep.subr.bf16.mxu0 0
        %835 = vmatpush1.bf16.xpose.msra.mxu0 0
        %836 = vmatprep.subr.bf16.mxu0 0
        %837 = vmatpush1.bf16.xpose.msra.mxu0 0
        %838 = vmatprep.mubr.bf16.mxu0 0
        %839 = vmatmul.mubr.bf16.gmra.mrb[0].mxu0 %v801
        %v840 = vpop.f32.mrb[0].mxu0
        %v841 = vadd.f32 %v570, %v840
        %v842 = vpop.f32.mrb[0].mxu0
        %v843 = vpop.f32.mrb[0].mxu0
        %v844 = vpop.f32.mrb[0].mxu0
        %845 = vdwg.mxu0
        %v846 = vsel %vm577, %v841, -inf
        %847 = vmax.xlane.f32.xlu0 %v846
        %v848 = vpop.xlane.xlu0 %847
        %v849 = vsub.f32 %v841, %v848
        %v850 = vmul.f32 %v849, 1.442695
        %v851 = vpow.pop %v850
        %v852 = vsel %vm577, %v851, 0.0
        %853 = vadd.xlane.f32.xlu0 %v852
        %v854 = vpop.xlane.xlu0 %853
        %v855 = vrcp.pop %v854
        %v856 = vmul.f32 %v851, %v855
        %v857 = vpack.c.bf16 %v856, %v856
        %858 = vrot.lane.b32.xlu0 %v573, 48
        %v859 = vpop.permute.xlu0 %858
        %v861 = vsel %vm577, %v857, 0
        %v864 = vsel %vm641, %v859, 0
        %866 = vmatprep.subr.bf16.mxu0 0
        %867 = vmatpush1.bf16.msra.mxu0 %v864
        %868 = vmatprep.subr.bf16.mxu0 0
        %869 = vmatpush1.bf16.msra.mxu0 0
        %870 = vmatprep.subr.bf16.mxu0 0
        %871 = vmatpush1.bf16.msra.mxu0 0
        %872 = vmatprep.subr.bf16.mxu0 0
        %873 = vmatpush1.bf16.msra.mxu0 0
        %874 = vmatprep.subr.bf16.mxu0 0
        %875 = vmatpush1.bf16.msra.mxu0 0
        %876 = vmatprep.subr.bf16.mxu0 0
        %877 = vmatpush1.bf16.msra.mxu0 0
        %878 = vmatprep.subr.bf16.mxu0 0
        %879 = vmatpush1.bf16.msra.mxu0 0
        %880 = vmatprep.subr.bf16.mxu0 0
        %881 = vmatpush1.bf16.msra.mxu0 0
        %882 = vmatprep.subr.bf16.mxu0 0
        %883 = vmatpush1.bf16.msra.mxu0 0
        %884 = vmatprep.subr.bf16.mxu0 0
        %885 = vmatpush1.bf16.msra.mxu0 0
        %886 = vmatprep.subr.bf16.mxu0 0
        %887 = vmatpush1.bf16.msra.mxu0 0
        %888 = vmatprep.subr.bf16.mxu0 0
        %889 = vmatpush1.bf16.msra.mxu0 0
        %890 = vmatprep.subr.bf16.mxu0 0
        %891 = vmatpush1.bf16.msra.mxu0 0
        %892 = vmatprep.subr.bf16.mxu0 0
        %893 = vmatpush1.bf16.msra.mxu0 0
        %894 = vmatprep.subr.bf16.mxu0 0
        %895 = vmatpush1.bf16.msra.mxu0 0
        %896 = vmatprep.subr.bf16.mxu0 0
        %897 = vmatpush1.bf16.msra.mxu0 0
        %898 = vmatprep.mubr.bf16.mxu0 0
        %899 = vmatmul.mubr.bf16.gmra.mrb[0].mxu0 %v861
        %v900 = vpop.f32.mrb[0].mxu0
        %v901 = vadd.f32 0.0, %v900
        %v902 = vpop.f32.mrb[0].mxu0
        %v903 = vpop.f32.mrb[0].mxu0
        %v904 = vpop.f32.mrb[0].mxu0
        %905 = vdwg.mxu0
        %906 = vrot.lane.b32.xlu0 %v572, 104
        %v907 = vpop.permute.xlu0 %906
        %908 = vrot.lane.b32.xlu0 %v573, 72
        %v909 = vpop.permute.xlu0 %908
        %v911 = vsel %vm577, %v907, 0
        %v914 = vsel %vm577, %v909, 0
        %916 = vmatprep.subr.bf16.mxu0 0
        %917 = vmatpush1.bf16.xpose.msra.mxu0 %v914
        %918 = vmatprep.subr.bf16.mxu0 0
        %919 = vmatpush1.bf16.xpose.msra.mxu0 0
        %920 = vmatprep.subr.bf16.mxu0 0
        %921 = vmatpush1.bf16.xpose.msra.mxu0 0
        %922 = vmatprep.subr.bf16.mxu0 0
        %923 = vmatpush1.bf16.xpose.msra.mxu0 0
        %924 = vmatprep.subr.bf16.mxu0 0
        %925 = vmatpush1.bf16.xpose.msra.mxu0 0
        %926 = vmatprep.subr.bf16.mxu0 0
        %927 = vmatpush1.bf16.xpose.msra.mxu0 0
        %928 = vmatprep.subr.bf16.mxu0 0
        %929 = vmatpush1.bf16.xpose.msra.mxu0 0
        %930 = vmatprep.subr.bf16.mxu0 0
        %931 = vmatpush1.bf16.xpose.msra.mxu0 0
        %932 = vmatprep.subr.bf16.mxu0 0
        %933 = vmatpush1.bf16.xpose.msra.mxu0 0
        %934 = vmatprep.subr.bf16.mxu0 0
        %935 = vmatpush1.bf16.xpose.msra.mxu0 0
        %936 = vmatprep.subr.bf16.mxu0 0
        %937 = vmatpush1.bf16.xpose.msra.mxu0 0
        %938 = vmatprep.subr.bf16.mxu0 0
        %939 = vmatpush1.bf16.xpose.msra.mxu0 0
        %940 = vmatprep.subr.bf16.mxu0 0
        %941 = vmatpush1.bf16.xpose.msra.mxu0 0
        %942 = vmatprep.subr.bf16.mxu0 0
        %943 = vmatpush1.bf16.xpose.msra.mxu0 0
        %944 = vmatprep.subr.bf16.mxu0 0
        %945 = vmatpush1.bf16.xpose.msra.mxu0 0
        %946 = vmatprep.subr.bf16.mxu0 0
        %947 = vmatpush1.bf16.xpose.msra.mxu0 0
        %948 = vmatprep.mubr.bf16.mxu0 0
        %949 = vmatmul.mubr.bf16.gmra.mrb[0].mxu0 %v911
        %v950 = vpop.f32.mrb[0].mxu0
        %v951 = vadd.f32 %v570, %v950
        %v952 = vpop.f32.mrb[0].mxu0
        %v953 = vpop.f32.mrb[0].mxu0
        %v954 = vpop.f32.mrb[0].mxu0
        %955 = vdwg.mxu0
        %v956 = vsel %vm577, %v951, -inf
        %957 = vmax.xlane.f32.xlu0 %v956
        %v958 = vpop.xlane.xlu0 %957
        %v959 = vsub.f32 %v951, %v958
        %v960 = vmul.f32 %v959, 1.442695
        %v961 = vpow.pop %v960
        %v962 = vsel %vm577, %v961, 0.0
        %963 = vadd.xlane.f32.xlu0 %v962
        %v964 = vpop.xlane.xlu0 %963
        %v965 = vrcp.pop %v964
        %v966 = vmul.f32 %v961, %v965
        %v967 = vpack.c.bf16 %v966, %v966
        %968 = vrot.lane.b32.xlu0 %v573, 40
        %v969 = vpop.permute.xlu0 %968
        %v971 = vsel %vm577, %v967, 0
        %v974 = vsel %vm641, %v969, 0
        %976 = vmatprep.subr.bf16.mxu0 0
        %977 = vmatpush1.bf16.msra.mxu0 %v974
        %978 = vmatprep.subr.bf16.mxu0 0
        %979 = vmatpush1.bf16.msra.mxu0 0
        %980 = vmatprep.subr.bf16.mxu0 0
        %981 = vmatpush1.bf16.msra.mxu0 0
        %982 = vmatprep.subr.bf16.mxu0 0
        %983 = vmatpush1.bf16.msra.mxu0 0
        %984 = vmatprep.subr.bf16.mxu0 0
        %985 = vmatpush1.bf16.msra.mxu0 0
        %986 = vmatprep.subr.bf16.mxu0 0
        %987 = vmatpush1.bf16.msra.mxu0 0
        %988 = vmatprep.subr.bf16.mxu0 0
        %989 = vmatpush1.bf16.msra.mxu0 0
        %990 = vmatprep.subr.bf16.mxu0 0
        %991 = vmatpush1.bf16.msra.mxu0 0
        %992 = vmatprep.subr.bf16.mxu0 0
        %993 = vmatpush1.bf16.msra.mxu0 0
        %994 = vmatprep.subr.bf16.mxu0 0
        %995 = vmatpush1.bf16.msra.mxu0 0
        %996 = vmatprep.subr.bf16.mxu0 0
        %997 = vmatpush1.bf16.msra.mxu0 0
        %998 = vmatprep.subr.bf16.mxu0 0
        %999 = vmatpush1.bf16.msra.mxu0 0
        %1000 = vmatprep.subr.bf16.mxu0 0
        %1001 = vmatpush1.bf16.msra.mxu0 0
        %1002 = vmatprep.subr.bf16.mxu0 0
        %1003 = vmatpush1.bf16.msra.mxu0 0
        %1004 = vmatprep.subr.bf16.mxu0 0
        %1005 = vmatpush1.bf16.msra.mxu0 0
        %1006 = vmatprep.subr.bf16.mxu0 0
        %1007 = vmatpush1.bf16.msra.mxu0 0
        %1008 = vmatprep.mubr.bf16.mxu0 0
        %1009 = vmatmul.mubr.bf16.gmra.mrb[0].mxu0 %v971
        %v1010 = vpop.f32.mrb[0].mxu0
        %v1011 = vadd.f32 0.0, %v1010
        %v1012 = vpop.f32.mrb[0].mxu0
        %v1013 = vpop.f32.mrb[0].mxu0
        %v1014 = vpop.f32.mrb[0].mxu0
        %1015 = vdwg.mxu0
        %1017 = vrot.lane.b32.xlu0 %v791, 8
        %v1018 = vpop.permute.xlu0 %1017
        %1021 = vrot.lane.b32.xlu0 %v901, 16
        %v1022 = vpop.permute.xlu0 %1021
        %1025 = vrot.lane.b32.xlu0 %v1011, 24
        %v1026 = vpop.permute.xlu0 %1025
        %v1028 = vsel %vm577, %v680, %v1018
        %vm1029 = vcmask 130048
        %v1030 = vsel %vm1029, %v1028, %v1022
        %vm1031 = vcmask 195584
        %v1032 = vsel %vm1031, %v1030, %v1026
        %v1033 = vpack.c.bf16 %v1032, %v1032
        %v1035 = vlaneseq
        %v1036 = vshrl.u32 %v1035, 7
        %v1037 = vsub.s32 0, %v1036
        %v1038 = vrot.slane %v449, %v1037
        %v1044 = vunpack.c.l.b16 %v445
        %v1045 = vunpack.c.l.b16 %v446
        %v1046 = vunpack.c.l.b16 %v447
        %v1047 = vunpack.c.l.b16 %v448
        %v1048 = vpack.c.b16 %v1045, %v1044
        %v1049 = vpack.c.b16 %v1047, %v1046
        %v1053 = vsel %vm474, %v1033, 0
        %1055 = vmatprep.subr.bf16.mxu0 0
        %1056 = vmatpush1.bf16.msra.mxu0 %v1048
        %1057 = vmatprep.subr.bf16.mxu0 0
        %1058 = vmatpush1.bf16.msra.mxu0 %v1049
        %1059 = vmatprep.subr.bf16.mxu0 0
        %1060 = vmatpush1.bf16.msra.mxu0 0
        %1061 = vmatprep.subr.bf16.mxu0 0
        %1062 = vmatpush1.bf16.msra.mxu0 0
        %1063 = vmatprep.subr.bf16.mxu0 0
        %1064 = vmatpush1.bf16.msra.mxu0 0
        %1065 = vmatprep.subr.bf16.mxu0 0
        %1066 = vmatpush1.bf16.msra.mxu0 0
        %1067 = vmatprep.subr.bf16.mxu0 0
        %1068 = vmatpush1.bf16.msra.mxu0 0
        %1069 = vmatprep.subr.bf16.mxu0 0
        %1070 = vmatpush1.bf16.msra.mxu0 0
        %1071 = vmatprep.subr.bf16.mxu0 0
        %1072 = vmatpush1.bf16.msra.mxu0 0
        %1073 = vmatprep.subr.bf16.mxu0 0
        %1074 = vmatpush1.bf16.msra.mxu0 0
        %1075 = vmatprep.subr.bf16.mxu0 0
        %1076 = vmatpush1.bf16.msra.mxu0 0
        %1077 = vmatprep.subr.bf16.mxu0 0
        %1078 = vmatpush1.bf16.msra.mxu0 0
        %1079 = vmatprep.subr.bf16.mxu0 0
        %1080 = vmatpush1.bf16.msra.mxu0 0
        %1081 = vmatprep.subr.bf16.mxu0 0
        %1082 = vmatpush1.bf16.msra.mxu0 0
        %1083 = vmatprep.subr.bf16.mxu0 0
        %1084 = vmatpush1.bf16.msra.mxu0 0
        %1085 = vmatprep.subr.bf16.mxu0 0
        %1086 = vmatpush1.bf16.msra.mxu0 0
        %1087 = vmatprep.mubr.bf16.mxu0 0
        %1088 = vmatmul.mubr.bf16.gmra.mrb[0].mxu0 %v1053
        %v1089 = vpop.f32.mrb[0].mxu0
        %v1090 = vadd.f32 %v1038, %v1089
        %v1091 = vpop.f32.mrb[0].mxu0
        %v1092 = vpop.f32.mrb[0].mxu0
        %v1093 = vpop.f32.mrb[0].mxu0
        %1094 = vdwg.mxu0
        %v1095 = vadd.f32 %v437, %v1090
        %v1096 = vsel %vm474, %v1095, 0.0
        %1097 = vadd.xlane.f32.xlu0 %v1096
        %v1098 = vpop.xlane.xlu0 %1097
        %v1099 = vmul.f32 %v1098, %v478
        %v1100 = vsub.f32 %v1095, %v1099
        %v1101 = vmul.f32 %v1100, %v1100
        %v1102 = vsel %vm474, %v1101, 0.0
        %1103 = vadd.xlane.f32.xlu0 %v1102
        %v1104 = vpop.xlane.xlu0 %1103
        %v1105 = vmul.f32 %v1104, %v478
        %v1106 = vadd.f32 %v1105, 1e-05
        %v1107 = vrsqrt.pop %v1106
        %v1108 = vmul.f32 %v1100, %v1107
        %v1110 = vlaneseq
        %v1111 = vshrl.u32 %v1110, 7
        %v1112 = vsub.s32 0, %v1111
        %v1113 = vrot.slane %v450, %v1112
        %v1115 = vmul.f32 %v1108, %v1113
        %v1117 = vlaneseq
        %v1118 = vshrl.u32 %v1117, 7
        %v1119 = vsub.s32 0, %v1118
        %v1120 = vrot.slane %v451, %v1119
        %v1122 = vadd.f32 %v1115, %v1120
        %v1123 = vpack.c.bf16 %v1122, %v1122
        %v1125 = vlaneseq
        %v1126 = vshrl.u32 %v1125, 7
        %v1127 = vsub.s32 0, %v1126
        %v1128 = vrot.slane %v456, %v1127
        %v1134 = vunpack.c.l.b16 %v452
        %v1135 = vunpack.c.l.b16 %v453
        %v1136 = vunpack.c.l.b16 %v454
        %v1137 = vunpack.c.l.b16 %v455
        %v1138 = vpack.c.b16 %v1135, %v1134
        %v1139 = vpack.c.b16 %v1137, %v1136
        %v1143 = vsel %vm474, %v1123, 0
        %1145 = vmatprep.subr.bf16.mxu0 0
        %1146 = vmatpush1.bf16.msra.mxu0 %v1138
        %1147 = vmatprep.subr.bf16.mxu0 0
        %1148 = vmatpush1.bf16.msra.mxu0 %v1139
        %1149 = vmatprep.subr.bf16.mxu0 0
        %1150 = vmatpush1.bf16.msra.mxu0 0
        %1151 = vmatprep.subr.bf16.mxu0 0
        %1152 = vmatpush1.bf16.msra.mxu0 0
        %1153 = vmatprep.subr.bf16.mxu0 0
        %1154 = vmatpush1.bf16.msra.mxu0 0
        %1155 = vmatprep.subr.bf16.mxu0 0
        %1156 = vmatpush1.bf16.msra.mxu0 0
        %1157 = vmatprep.subr.bf16.mxu0 0
        %1158 = vmatpush1.bf16.msra.mxu0 0
        %1159 = vmatprep.subr.bf16.mxu0 0
        %1160 = vmatpush1.bf16.msra.mxu0 0
        %1161 = vmatprep.subr.bf16.mxu0 0
        %1162 = vmatpush1.bf16.msra.mxu0 0
        %1163 = vmatprep.subr.bf16.mxu0 0
        %1164 = vmatpush1.bf16.msra.mxu0 0
        %1165 = vmatprep.subr.bf16.mxu0 0
        %1166 = vmatpush1.bf16.msra.mxu0 0
        %1167 = vmatprep.subr.bf16.mxu0 0
        %1168 = vmatpush1.bf16.msra.mxu0 0
        %1169 = vmatprep.subr.bf16.mxu0 0
        %1170 = vmatpush1.bf16.msra.mxu0 0
        %1171 = vmatprep.subr.bf16.mxu0 0
        %1172 = vmatpush1.bf16.msra.mxu0 0
        %1173 = vmatprep.subr.bf16.mxu0 0
        %1174 = vmatpush1.bf16.msra.mxu0 0
        %1175 = vmatprep.subr.bf16.mxu0 0
        %1176 = vmatpush1.bf16.msra.mxu0 0
        %1177 = vmatprep.mubr.bf16.mxu0 0
        %1178 = vmatmul.mubr.bf16.gmra.mrb[0].mxu0 %v1143
        %v1179 = vpop.f32.mrb[0].mxu0
        %v1180 = vadd.f32 %v1128, %v1179
        %v1181 = vpop.f32.mrb[0].mxu0
        %v1182 = vpop.f32.mrb[0].mxu0
        %v1183 = vpop.f32.mrb[0].mxu0
        %1184 = vdwg.mxu0
        %v1185 = vmul.f32 %v1180, 0.5
        %v1186 = vmul.f32 %v1180, 0.044715
        %v1187 = vmul.f32 %v1186, %v1180
        %v1188 = vmul.f32 %v1187, %v1180
        %v1189 = vadd.f32 %v1180, %v1188
        %v1190 = vmul.f32 %v1189, 0.7978846
        %v1191 = vtanh.pop %v1190
        %v1192 = vadd.f32 %v1191, 1.0
        %v1193 = vmul.f32 %v1185, %v1192
        %v1194 = vpack.c.bf16 %v1193, %v1193
        %v1196 = vlaneseq
        %v1197 = vshrl.u32 %v1196, 7
        %v1198 = vsub.s32 0, %v1197
        %v1199 = vrot.slane %v473, %v1198
        %v1217 = vunpack.c.l.b16 %v457
        %v1218 = vunpack.c.l.b16 %v458
        %v1219 = vunpack.c.l.b16 %v459
        %v1220 = vunpack.c.l.b16 %v460
        %v1221 = vunpack.c.l.b16 %v461
        %v1222 = vunpack.c.l.b16 %v462
        %v1223 = vunpack.c.l.b16 %v463
        %v1224 = vunpack.c.l.b16 %v464
        %v1225 = vunpack.c.l.b16 %v465
        %v1226 = vunpack.c.l.b16 %v466
        %v1227 = vunpack.c.l.b16 %v467
        %v1228 = vunpack.c.l.b16 %v468
        %v1229 = vunpack.c.l.b16 %v469
        %v1230 = vunpack.c.l.b16 %v470
        %v1231 = vunpack.c.l.b16 %v471
        %v1232 = vunpack.c.l.b16 %v472
        %v1233 = vpack.c.b16 %v1218, %v1217
        %v1234 = vpack.c.b16 %v1220, %v1219
        %v1235 = vpack.c.b16 %v1222, %v1221
        %v1236 = vpack.c.b16 %v1224, %v1223
        %v1237 = vpack.c.b16 %v1226, %v1225
        %v1238 = vpack.c.b16 %v1228, %v1227
        %v1239 = vpack.c.b16 %v1230, %v1229
        %v1240 = vpack.c.b16 %v1232, %v1231
        %1249 = vmatprep.subr.bf16.mxu0 0
        %1250 = vmatpush1.bf16.msra.mxu0 %v1233
        %1251 = vmatprep.subr.bf16.mxu0 0
        %1252 = vmatpush1.bf16.msra.mxu0 %v1234
        %1253 = vmatprep.subr.bf16.mxu0 0
        %1254 = vmatpush1.bf16.msra.mxu0 %v1235
        %1255 = vmatprep.subr.bf16.mxu0 0
        %1256 = vmatpush1.bf16.msra.mxu0 %v1236
        %1257 = vmatprep.subr.bf16.mxu0 0
        %1258 = vmatpush1.bf16.msra.mxu0 %v1237
        %1259 = vmatprep.subr.bf16.mxu0 0
        %1260 = vmatpush1.bf16.msra.mxu0 %v1238
        %1261 = vmatprep.subr.bf16.mxu0 0
        %1262 = vmatpush1.bf16.msra.mxu0 %v1239
        %1263 = vmatprep.subr.bf16.mxu0 0
        %1264 = vmatpush1.bf16.msra.mxu0 %v1240
        %1265 = vmatprep.subr.bf16.mxu0 0
        %1266 = vmatpush1.bf16.msra.mxu0 0
        %1267 = vmatprep.subr.bf16.mxu0 0
        %1268 = vmatpush1.bf16.msra.mxu0 0
        %1269 = vmatprep.subr.bf16.mxu0 0
        %1270 = vmatpush1.bf16.msra.mxu0 0
        %1271 = vmatprep.subr.bf16.mxu0 0
        %1272 = vmatpush1.bf16.msra.mxu0 0
        %1273 = vmatprep.subr.bf16.mxu0 0
        %1274 = vmatpush1.bf16.msra.mxu0 0
        %1275 = vmatprep.subr.bf16.mxu0 0
        %1276 = vmatpush1.bf16.msra.mxu0 0
        %1277 = vmatprep.subr.bf16.mxu0 0
        %1278 = vmatpush1.bf16.msra.mxu0 0
        %1279 = vmatprep.subr.bf16.mxu0 0
        %1280 = vmatpush1.bf16.msra.mxu0 0
        %1281 = vmatprep.mubr.bf16.mxu0 0
        %1282 = vmatmul.mubr.bf16.gmra.mrb[0].mxu0 %v1194
        %v1283 = vpop.f32.mrb[0].mxu0
        %v1284 = vadd.f32 %v1199, %v1283
        %v1285 = vpop.f32.mrb[0].mxu0
        %v1286 = vpop.f32.mrb[0].mxu0
        %v1287 = vpop.f32.mrb[0].mxu0
        %1288 = vdwg.mxu0
        %v1289 = vadd.f32 %v1095, %v1284
        %1290 = vst.msk [vmem:[%s431] sm:$0xff] %vm474, %v1289
        %s1291 = sand.u32 %s313, 1
        %s1292 = scalar_lea.sflag [#allocation3], %s1291
        %s1293 = sand.u32 %s313, 1
        %s1294 = smul.addr %s1293, 8
        %s1295 = scalar_lea.vmem [#allocation2], %s1294
        // Predicated region
        $region73: #{tpu_custom_call.1} parent=71 // pred_check
          %p1296 = pneg %p323
        $region74: #{tpu_custom_call.1} parent=71 // pred_check_branch
          %1298 = sbr.rel (%p1296) target = $region76
        $region75: #{tpu_custom_call.1} parent=71 // pred_region
          %s1300 = ssub.s32 128, 128
          %1301 = vsyncadd %s1292, %s1300
          %s1302 = smul.addr %s27, 128
          %s1303 = scalar_lea.hbm %s13, %s1302
          %s1305 = sshll.u32 %s1295, 4
          %s1306 = int_to_ptr.vmem [resolvable:$true] %s1305
          %1308 = dma.vmem_to_hbm [thread:$0]  %s1306, 128, %s1303, %s1292
        $region76: #{tpu_custom_call.1} parent=71 // pred_fallthru
          _
      $region72: #{tpu_custom_call.1} parent=5 // pred_fallthru
        _
      %p1309 = scmp.le.s32.totalorder 2, %s22
      // Predicated region
      $region77: #{tpu_custom_call.1} parent=5 // pred_check
        %p1310 = pneg %p1309
      $region78: #{tpu_custom_call.1} parent=5 // pred_check_branch
        %1312 = sbr.rel (%p1310) target = $region80
      $region79: #{tpu_custom_call.1} parent=5 // pred_region
        %s1313 = ssub.s32 %s22, 2
        // Predicated region
        $region81: #{tpu_custom_call.1} parent=79 // pred_check
          %p1314 = pneg %p329
        $region82: #{tpu_custom_call.1} parent=79 // pred_check_branch
          %1316 = sbr.rel (%p1314) target = $region84
        $region83: #{tpu_custom_call.1} parent=79 // pred_region
          %s1317 = sand.u32 %s314, 1
          %s1318 = scalar_lea.sflag [#allocation3], %s1317
          %s1319 = sand.u32 %s314, 1
          %s1320 = smul.addr %s1319, 8
          %s1321 = scalar_lea.vmem [#allocation2], %s1320
          %1322 = dma.done %s1318, 128
        $region84: #{tpu_custom_call.1} parent=79 // pred_fallthru
          _
      $region80: #{tpu_custom_call.1} parent=5 // pred_fallthru
        _
    $region6: #{tpu_custom_call.1} parent=1 // loop_footer
      %s26 = sadd.s32 1, %s22
    $region7: #{tpu_custom_call.1} parent=1 // loop_footer_branch
      %21 = sbr.rel target = $region3
    $region8: #{tpu_custom_call.1} parent=1 // loop_exit
      _
    %1323 = vsyncpa [#allocation3], 1
    %s1324 = scalar_lea.sflag [#allocation3], 1
    %1325 = vsyncpa %s1324, 1

</llo_original>
